<compile_context>
chip_gen: v7x
topology: tpu7x:2x2x1
jax: 0.10.0
libtpu: 0.0.40
codegen_flags: <defaults>
</compile_context>

<pallas_src>
import jax
import jax.numpy as jnp
from jax import lax
from jax.experimental import pallas as pl
from jax.experimental.pallas import tpu as pltpu


def _graph_res_block_kernel(nbr_ref, x_ref, w_agg_ref, w_self_ref, b_ref, o_ref):
    """One grid step = one tile of TM nodes.

    nbr_ref   : [K, TM, C] neighbour feature rows (traversal output, self-padded)
    x_ref     : [TM, C]    node features of this tile
    w_agg_ref : [C, C]     top half of the (2C, C) linear weight (acts on the aggregate)
    w_self_ref: [C, C]     bottom half (acts on the original node features)
    b_ref     : [1, C]     bias
    o_ref     : [TM, C]    ReLU(Linear(concat[max_k nbr, x]) + x)
    """
    k_slots = nbr_ref.shape[0]

    # NeighbourMax reduce: elementwise max over the K neighbour slots (VPU, unrolled; K small).
    agg = nbr_ref[0]
    for k in range(1, k_slots):
        agg = jnp.maximum(agg, nbr_ref[k])

    x = x_ref[...]

    # Linear(2C -> C) on concat([agg, x]) == agg @ Wt[:C] + x @ Wt[C:]  (MXU, f32 accumulate).
    z = jnp.dot(agg, w_agg_ref[...], preferred_element_type=jnp.float32)
    z = z + jnp.dot(x, w_self_ref[...], preferred_element_type=jnp.float32)
    z = z + b_ref[...]

    # activation(out + graph): residual add + ReLU, applied post-dot on the [TM, C] tile.
    o_ref[...] = jnp.maximum(z + x, 0.0).astype(o_ref.dtype)


def _pick_tile_m(n):
    """MXU M dim is 256 on v6e/v7x and 128 on v5e and older -> fill it (perf feedback #1)."""
    try:
        kind = jax.devices()[0].device_kind.lower()
    except Exception:
        kind = ""
    cap = 128 if any(v in kind for v in ("v2", "v3", "v4", "v5")) else 256
    tm = min(n, cap)
    while tm > 8 and n % tm != 0:
        tm //= 2
    return tm


def graph_res_block_forward(node_features, neighbour_idx, weight, bias, *, tile_m=None):
    """GraphResBlock.forward: ReLU( Linear_{2C->C}(concat[NeighbourMax(x), x]) + x )."""
    n, c = node_features.shape
    k_slots = neighbour_idx.shape[1]
    assert weight.shape == (c, 2 * c), "nn.Linear(2*channels, channels) weight expected"
    assert bias.shape == (c,)

    if tile_m is None:
        tile_m = _pick_tile_m(n)
    assert n % tile_m == 0, f"N={n} must be divisible by tile_m={tile_m}"

    # traversal extract (packed=True): neighbour feature rows, laid out [K, N, C] so the
    # kernel's tiles are lane dense and the K axis is a cheap leading-dim index.
    nbr_feats = node_features[neighbour_idx.T]                  # [K, N, C]
    w_t = weight.T                                              # [2C, C]
    w_agg, w_self = w_t[:c, :], w_t[c:, :]                      # [C, C] each
    bias2d = bias.reshape(1, c)

    flops = 2 * n * (2 * c) * c + n * k_slots * c
    bytes_accessed = 4 * (k_slots * n * c + 2 * n * c + 2 * c * c + c)

    grid = (n // tile_m,)
    return pl.pallas_call(
        _graph_res_block_kernel,
        out_shape=jax.ShapeDtypeStruct((n, c), node_features.dtype),
        grid=grid,
        in_specs=[
            pl.BlockSpec((k_slots, tile_m, c), lambda i: (0, i, 0)),   # neighbour rows
            pl.BlockSpec((tile_m, c), lambda i: (i, 0)),               # node features
            pl.BlockSpec((c, c), lambda i: (0, 0)),                    # W (aggregate half)
            pl.BlockSpec((c, c), lambda i: (0, 0)),                    # W (self half)
            pl.BlockSpec((1, c), lambda i: (0, 0)),                    # bias
        ],
        out_specs=pl.BlockSpec((tile_m, c), lambda i: (i, 0)),
        compiler_params=pltpu.CompilerParams(
            dimension_semantics=("parallel",),        # shard node tiles across TCs on v7x
            vmem_limit_bytes=32 * 1024 * 1024,        # bounded, N-independent working set
        ),
        cost_estimate=pl.CostEstimate(
            flops=flops, transcendentals=0, bytes_accessed=bytes_accessed),
    )(nbr_feats, node_features, w_agg, w_self, bias2d)


def ring_traversal(num_nodes, max_neighbours):
    """StandardNodeTraversal(depth=1, with_self=True) on a synthetic ring graph, materialized
    as a padded [N, K] int32 index table. Row i = {i} + forward ring neighbours (ragged
    degree); unused slots repeat the self index, which is max-neutral since the node itself
    is always a member of its own neighbourhood."""
    rows = []
    for i in range(num_nodes):
        deg = (i % (max_neighbours - 1)) + 1
        nbrs = [i] + [(i + 1 + j) % num_nodes for j in range(deg)]
        nbrs = nbrs + [i] * (max_neighbours - len(nbrs))
        rows.append(nbrs)
    return jnp.asarray(rows, dtype=jnp.int32)


def reference_forward(node_features, neighbour_idx, weight, bias):
    """Pure-JAX reference of GraphResBlock.forward under the same concretization."""
    gathered = node_features[neighbour_idx]                      # [N, K, C]
    agg = gathered.max(axis=1)                                   # NeighbourMax
    feats = jnp.concatenate([agg, node_features], axis=-1)       # [N, 2C]
    z = jnp.dot(feats, weight.T, precision=lax.Precision.HIGHEST) + bias
    return jnp.maximum(z + node_features, 0.0)


if __name__ == "__main__":
    N, C, K = 512, 128, 8    # nodes, channels (lane axis), max neighbourhood size

    key = jax.random.PRNGKey(0)
    kx, kw, kb = jax.random.split(key, 3)
    node_features = jax.random.normal(kx, (N, C), dtype=jnp.float32)
    weight = jax.random.normal(kw, (C, 2 * C), dtype=jnp.float32) / jnp.sqrt(2.0 * C)
    bias = 0.1 * jax.random.normal(kb, (C,), dtype=jnp.float32)
    neighbour_idx = ring_traversal(N, K)        # traversal(graph)

    out = graph_res_block_forward(node_features, neighbour_idx, weight, bias)
    out = jax.block_until_ready(out)

    ref = reference_forward(node_features, neighbour_idx, weight, bias)
    assert out.shape == (N, C)
    assert jnp.allclose(out, ref, atol=1e-3, rtol=1e-3), "mismatch vs pure-JAX reference"

    print("KERNEL_OK")
</pallas_src>

<mosaic_0001>
module attributes {stable_mosaic.version = 11 : i64} {
  func.func @_graph_res_block_kernel(%arg0: i32, %arg1: memref<8x256x128xf32, #tpu.memory_space<vmem>>, %arg2: memref<256x128xf32, #tpu.memory_space<vmem>>, %arg3: memref<128x128xf32, #tpu.memory_space<vmem>>, %arg4: memref<128x128xf32, #tpu.memory_space<vmem>>, %arg5: memref<1x128xf32, #tpu.memory_space<vmem>>, %arg6: memref<256x128xf32, #tpu.memory_space<vmem>>) attributes {dimension_semantics = [#tpu.dimension_semantics<parallel>], iteration_bounds = array<i64: 2>, scalar_prefetch = 0 : i64, scratch_operands = 0 : i64, tpu.core_type = #tpu.core_type<tc>, window_params = [{transform_indices = @transform_0, window_bounds = array<i64: 8, 256, 128>}, {transform_indices = @transform_1, window_bounds = array<i64: 256, 128>}, {pipeline_mode = #tpu.pipeline_mode<synchronous>, transform_indices = @transform_2, window_bounds = array<i64: 128, 128>}, {pipeline_mode = #tpu.pipeline_mode<synchronous>, transform_indices = @transform_3, window_bounds = array<i64: 128, 128>}, {pipeline_mode = #tpu.pipeline_mode<synchronous>, transform_indices = @transform_4, window_bounds = array<i64: 1, 128>}, {transform_indices = @transform_5, window_bounds = array<i64: 256, 128>}]} {
    %c0 = arith.constant 0 : index
    %c0_0 = arith.constant 0 : index
    %c0_1 = arith.constant 0 : index
    %0 = vector.load %arg1[%c0, %c0_0, %c0_1] : memref<8x256x128xf32, #tpu.memory_space<vmem>>, vector<1x256x128xf32>
    %1 = vector.shape_cast %0 : vector<1x256x128xf32> to vector<256x128xf32>
    %c1 = arith.constant 1 : index
    %c0_2 = arith.constant 0 : index
    %c0_3 = arith.constant 0 : index
    %2 = vector.load %arg1[%c1, %c0_2, %c0_3] : memref<8x256x128xf32, #tpu.memory_space<vmem>>, vector<1x256x128xf32>
    %3 = vector.shape_cast %2 : vector<1x256x128xf32> to vector<256x128xf32>
    %4 = arith.maximumf %1, %3 : vector<256x128xf32>
    %c2 = arith.constant 2 : index
    %c0_4 = arith.constant 0 : index
    %c0_5 = arith.constant 0 : index
    %5 = vector.load %arg1[%c2, %c0_4, %c0_5] : memref<8x256x128xf32, #tpu.memory_space<vmem>>, vector<1x256x128xf32>
    %6 = vector.shape_cast %5 : vector<1x256x128xf32> to vector<256x128xf32>
    %7 = arith.maximumf %4, %6 : vector<256x128xf32>
    %c3 = arith.constant 3 : index
    %c0_6 = arith.constant 0 : index
    %c0_7 = arith.constant 0 : index
    %8 = vector.load %arg1[%c3, %c0_6, %c0_7] : memref<8x256x128xf32, #tpu.memory_space<vmem>>, vector<1x256x128xf32>
    %9 = vector.shape_cast %8 : vector<1x256x128xf32> to vector<256x128xf32>
    %10 = arith.maximumf %7, %9 : vector<256x128xf32>
    %c4 = arith.constant 4 : index
    %c0_8 = arith.constant 0 : index
    %c0_9 = arith.constant 0 : index
    %11 = vector.load %arg1[%c4, %c0_8, %c0_9] : memref<8x256x128xf32, #tpu.memory_space<vmem>>, vector<1x256x128xf32>
    %12 = vector.shape_cast %11 : vector<1x256x128xf32> to vector<256x128xf32>
    %13 = arith.maximumf %10, %12 : vector<256x128xf32>
    %c5 = arith.constant 5 : index
    %c0_10 = arith.constant 0 : index
    %c0_11 = arith.constant 0 : index
    %14 = vector.load %arg1[%c5, %c0_10, %c0_11] : memref<8x256x128xf32, #tpu.memory_space<vmem>>, vector<1x256x128xf32>
    %15 = vector.shape_cast %14 : vector<1x256x128xf32> to vector<256x128xf32>
    %16 = arith.maximumf %13, %15 : vector<256x128xf32>
    %c6 = arith.constant 6 : index
    %c0_12 = arith.constant 0 : index
    %c0_13 = arith.constant 0 : index
    %17 = vector.load %arg1[%c6, %c0_12, %c0_13] : memref<8x256x128xf32, #tpu.memory_space<vmem>>, vector<1x256x128xf32>
    %18 = vector.shape_cast %17 : vector<1x256x128xf32> to vector<256x128xf32>
    %19 = arith.maximumf %16, %18 : vector<256x128xf32>
    %c7 = arith.constant 7 : index
    %c0_14 = arith.constant 0 : index
    %c0_15 = arith.constant 0 : index
    %20 = vector.load %arg1[%c7, %c0_14, %c0_15] : memref<8x256x128xf32, #tpu.memory_space<vmem>>, vector<1x256x128xf32>
    %21 = vector.shape_cast %20 : vector<1x256x128xf32> to vector<256x128xf32>
    %22 = arith.maximumf %19, %21 : vector<256x128xf32>
    %c0_16 = arith.constant 0 : index
    %c0_17 = arith.constant 0 : index
    %23 = vector.load %arg2[%c0_16, %c0_17] : memref<256x128xf32, #tpu.memory_space<vmem>>, vector<256x128xf32>
    %c0_18 = arith.constant 0 : index
    %c0_19 = arith.constant 0 : index
    %24 = vector.load %arg3[%c0_18, %c0_19] : memref<128x128xf32, #tpu.memory_space<vmem>>, vector<128x128xf32>
    %cst = arith.constant dense<0.000000e+00> : vector<256x128xf32>
    %25 = tpu.matmul %22, %24, %cst {dimension_numbers = #tpu.dot_dimension_numbers<[1], [0], [0], [1], [0, 0, 1, 1], [], []>} : vector<256x128xf32>, vector<128x128xf32>, vector<256x128xf32> -> vector<256x128xf32>
    %c0_20 = arith.constant 0 : index
    %c0_21 = arith.constant 0 : index
    %26 = vector.load %arg4[%c0_20, %c0_21] : memref<128x128xf32, #tpu.memory_space<vmem>>, vector<128x128xf32>
    %cst_22 = arith.constant dense<0.000000e+00> : vector<256x128xf32>
    %27 = tpu.matmul %23, %26, %cst_22 {dimension_numbers = #tpu.dot_dimension_numbers<[1], [0], [0], [1], [0, 0, 1, 1], [], []>} : vector<256x128xf32>, vector<128x128xf32>, vector<256x128xf32> -> vector<256x128xf32>
    %28 = arith.addf %25, %27 : vector<256x128xf32>
    %c0_23 = arith.constant 0 : index
    %c0_24 = arith.constant 0 : index
    %29 = vector.load %arg5[%c0_23, %c0_24] : memref<1x128xf32, #tpu.memory_space<vmem>>, vector<1x128xf32>
    %30 = vector.broadcast %29 : vector<1x128xf32> to vector<256x128xf32>
    %31 = arith.addf %28, %30 : vector<256x128xf32>
    %32 = arith.addf %31, %23 : vector<256x128xf32>
    %cst_25 = arith.constant 0.000000e+00 : f32
    %33 = vector.broadcast %cst_25 : f32 to vector<256x128xf32>
    %34 = arith.maximumf %32, %33 : vector<256x128xf32>
    %c0_26 = arith.constant 0 : index
    %c0_27 = arith.constant 0 : index
    %35 = vector.load %arg6[%c0_26, %c0_27] : memref<256x128xf32, #tpu.memory_space<vmem>>, vector<256x128xf32>
    tpu.vector_store %arg6[%c0_26, %c0_27], %34 {strides = array<i32>} : memref<256x128xf32, #tpu.memory_space<vmem>>, vector<256x128xf32>,
    return
  }
  func.func @transform_0(%arg0: i32) -> (i32, i32, i32) {
    %c0_i32 = arith.constant 0 : i32
    %c0_i32_0 = arith.constant 0 : i32
    %c0_i32_1 = arith.constant 0 : i32
    return %c0_i32, %arg0, %c0_i32_0 : i32, i32, i32
  }
  func.func @transform_1(%arg0: i32) -> (i32, i32) {
    %c0_i32 = arith.constant 0 : i32
    %c0_i32_0 = arith.constant 0 : i32
    return %arg0, %c0_i32 : i32, i32
  }
  func.func @transform_2(%arg0: i32) -> (i32, i32) {
    %c0_i32 = arith.constant 0 : i32
    %c0_i32_0 = arith.constant 0 : i32
    %c0_i32_1 = arith.constant 0 : i32
    return %c0_i32, %c0_i32_0 : i32, i32
  }
  func.func @transform_3(%arg0: i32) -> (i32, i32) {
    %c0_i32 = arith.constant 0 : i32
    %c0_i32_0 = arith.constant 0 : i32
    %c0_i32_1 = arith.constant 0 : i32
    return %c0_i32, %c0_i32_0 : i32, i32
  }
  func.func @transform_4(%arg0: i32) -> (i32, i32) {
    %c0_i32 = arith.constant 0 : i32
    %c0_i32_0 = arith.constant 0 : i32
    %c0_i32_1 = arith.constant 0 : i32
    return %c0_i32, %c0_i32_0 : i32, i32
  }
  func.func @transform_5(%arg0: i32) -> (i32, i32) {
    %c0_i32 = arith.constant 0 : i32
    %c0_i32_0 = arith.constant 0 : i32
    return %arg0, %c0_i32 : i32, i32
  }
}

</mosaic_0001>

<llo_original>
// kernel: tpu_custom_call.1
$region0: #{tpu_custom_call.1}
  #allocation0 [shape = 'u32[]', space=smem, size = 0x4, offset = 0x4, fixed_abs, tag = 'smem constant byte address 0x4 - core index']
  #allocation1 [shape = 'u32[144,128]{1,0:T(1,128)}', space=vmem, size = 0x12000, scoped, tag = 'internal scratch']
  #allocation12 [shape = 's32[]', space=sflag, size = 0x4, offset = 0, fixed_abs, tag = 'sflag constant byte address 0x0 - dummy sync flag']
  %s0 = inlined_call_operand.hbm [shape: f32[8,512,128], index: 0, kind: input, shape index: {}]
  %s1 = inlined_call_operand.hbm [shape: f32[512,128], index: 1, kind: input, shape index: {}]
  %s2 = inlined_call_operand.hbm [shape: f32[128,128], index: 2, kind: input, shape index: {}]
  %s3 = inlined_call_operand.hbm [shape: f32[128,128], index: 3, kind: input, shape index: {}]
  %s4 = inlined_call_operand.hbm [shape: f32[1,128], index: 4, kind: input, shape index: {}]
  %s5 = inlined_call_operand.hbm [shape: f32[512,128], index: 5, kind: output, shape index: {}]
  %s6 = sld [smem:[#allocation0]]
  $region73: #{tpu_custom_call.1} parent=0
    _
  %s8 = ssub.s32 1, %s6
  %s9 = scalar_select 0, %s8, %s6
  $region1: #{tpu_custom_call.1} parent=0
    #allocation2 [shape = 'u8[2097152]{0}', space=vmem, size = 0x200000, scoped, tag = 'input window, operand 0']
    #allocation3 [shape = 's32[2]{0}', space=sflag, size = 0x8, scoped, tag = 'scoped memory for tpu_custom_call.1']
    #allocation4 [shape = 's32[2]{0}', space=sflag, size = 0x8, scoped, tag = 'scoped memory for tpu_custom_call.1']
    #allocation5 [shape = 'u8[262144]{0}', space=vmem, size = 0x40000, scoped, tag = 'input window, operand 1']
    #allocation6 [shape = 's32[2]{0}', space=sflag, size = 0x8, scoped, tag = 'scoped memory for tpu_custom_call.1']
    #allocation7 [shape = 'u8[65536]{0}', space=vmem, size = 0x10000, scoped, tag = 'input window, operand 2, single buffered']
    #allocation8 [shape = 'u8[65536]{0}', space=vmem, size = 0x10000, scoped, tag = 'input window, operand 3, single buffered']
    #allocation9 [shape = 's32[1]{0}', space=sflag, size = 0x4, scoped, tag = 'scoped memory for tpu_custom_call.1']
    #allocation10 [shape = 'u8[512]{0}', space=vmem, size = 0x400, scoped, tag = 'input window, operand 4, single buffered']
    #allocation11 [shape = 'u8[262144]{0}', space=vmem, size = 0x40000, scoped, tag = 'output window, operand 0']
    %10 = vsyncpa [#allocation3], 0
    %s11 = scalar_lea.sflag [#allocation3], 1
    %12 = vsyncpa %s11, 0
    %13 = vsyncpa [#allocation6], 0
    %s14 = scalar_lea.sflag [#allocation6], 1
    %15 = vsyncpa %s14, 0
    %16 = vsyncpa [#allocation9], 0
    %17 = vsyncpa [#allocation4], 0
    %s18 = scalar_lea.sflag [#allocation4], 1
    %19 = vsyncpa %s18, 0
    loop: start=0, step=1, limit=4
    $region2: #{tpu_custom_call.1} parent=1 // loop_pre_header
      _
    $region3: #{tpu_custom_call.1} parent=1 // loop_header
      %s21 = sphi 0, %s25
      %p22 = scmp.ge.s32.totalorder %s21, 4
      %s31 = sphi 0, %s33
      %s34 = sphi 0, %s31
      %s35 = sphi 0, %s34
      %s51 = sphi 0, %s35
      %s57 = sphi 0, %s59
      %s60 = sphi 0, %s57
      %s61 = sphi 0, %s60
      %s77 = sphi 0, %s61
      %s81 = sphi 0, %s81
      %s83 = sphi 0, %s81
      %s84 = sphi 0, %s83
      %s98 = sphi 0, %s84
      %s102 = sphi 0, %s102
      %s104 = sphi 0, %s102
      %s105 = sphi 0, %s104
      %s119 = sphi 0, %s105
      %s123 = sphi 0, %s123
      %s125 = sphi 0, %s123
      %s126 = sphi 0, %s125
      %s140 = sphi 0, %s126
      %s146 = sphi 0, %s148
      %s149 = sphi 0, %s146
      %s150 = sphi 0, %s149
      %s166 = sphi 0, %s150
    $region4: #{tpu_custom_call.1} parent=1 // loop_header_branch
      %24 = sbr.rel (%p22) target = $region8
    $region5: #{tpu_custom_call.1} parent=1 // loop_body
      %s26 = ssub.s32 %s21, 1
      %s27 = ssub.s32 %s21, 2
      %s28 = sadd.s32 %s21, 1
      %s29 = ssub.s32 %s21, %s28
      %p30 = scmp.eq.s32.totalorder %s29, 0
      %s32 = sadd.s32 %s31, 1
      %s33 = scalar_select %p30, %s31, %s32
      %p36 = pneg %p30
      %p37 = scmp.eq.s32.totalorder %s21, 1
      %p38 = por %p36, %p37
      %p39 = scmp.ne.s32.totalorder %s31, %s34
      %p40 = scmp.eq.s32.totalorder %s21, 0
      %p41 = por %p39, %p40
      %p42 = scmp.ne.s32.totalorder %s31, %s34
      %p43 = scmp.eq.s32.totalorder %s26, 1
      %p44 = por %p42, %p43
      %p45 = scmp.ne.s32.totalorder %s34, %s35
      %p46 = scmp.eq.s32.totalorder %s26, 0
      %p47 = por %p45, %p46
      %p48 = scmp.ne.s32.totalorder %s34, %s35
      %p49 = scmp.eq.s32.totalorder %s27, 1
      %p50 = por %p48, %p49
      %p52 = scmp.ne.s32.totalorder %s35, %s51
      %p53 = scmp.eq.s32.totalorder %s27, 0
      %p54 = por %p52, %p53
      %s55 = ssub.s32 %s21, %s28
      %p56 = scmp.eq.s32.totalorder %s55, 0
      %s58 = sadd.s32 %s57, 1
      %s59 = scalar_select %p56, %s57, %s58
      %p62 = pneg %p56
      %p63 = scmp.eq.s32.totalorder %s21, 1
      %p64 = por %p62, %p63
      %p65 = scmp.ne.s32.totalorder %s57, %s60
      %p66 = scmp.eq.s32.totalorder %s21, 0
      %p67 = por %p65, %p66
      %p68 = scmp.ne.s32.totalorder %s57, %s60
      %p69 = scmp.eq.s32.totalorder %s26, 1
      %p70 = por %p68, %p69
      %p71 = scmp.ne.s32.totalorder %s60, %s61
      %p72 = scmp.eq.s32.totalorder %s26, 0
      %p73 = por %p71, %p72
      %p74 = scmp.ne.s32.totalorder %s60, %s61
      %p75 = scmp.eq.s32.totalorder %s27, 1
      %p76 = por %p74, %p75
      %p78 = scmp.ne.s32.totalorder %s61, %s77
      %p79 = scmp.eq.s32.totalorder %s27, 0
      %p80 = por %p78, %p79
      %s82 = sadd.s32 %s81, 1
      %p85 = scmp.eq.s32.totalorder %s21, 1
      %p86 = scmp.ne.s32.totalorder %s81, %s83
      %p87 = scmp.eq.s32.totalorder %s21, 0
      %p88 = por %p86, %p87
      %p89 = scmp.ne.s32.totalorder %s81, %s83
      %p90 = scmp.eq.s32.totalorder %s26, 1
      %p91 = por %p89, %p90
      %p92 = scmp.ne.s32.totalorder %s83, %s84
      %p93 = scmp.eq.s32.totalorder %s26, 0
      %p94 = por %p92, %p93
      %p95 = scmp.ne.s32.totalorder %s83, %s84
      %p96 = scmp.eq.s32.totalorder %s27, 1
      %p97 = por %p95, %p96
      %p99 = scmp.ne.s32.totalorder %s84, %s98
      %p100 = scmp.eq.s32.totalorder %s27, 0
      %p101 = por %p99, %p100
      %s103 = sadd.s32 %s102, 1
      %p106 = scmp.eq.s32.totalorder %s21, 1
      %p107 = scmp.ne.s32.totalorder %s102, %s104
      %p108 = scmp.eq.s32.totalorder %s21, 0
      %p109 = por %p107, %p108
      %p110 = scmp.ne.s32.totalorder %s102, %s104
      %p111 = scmp.eq.s32.totalorder %s26, 1
      %p112 = por %p110, %p111
      %p113 = scmp.ne.s32.totalorder %s104, %s105
      %p114 = scmp.eq.s32.totalorder %s26, 0
      %p115 = por %p113, %p114
      %p116 = scmp.ne.s32.totalorder %s104, %s105
      %p117 = scmp.eq.s32.totalorder %s27, 1
      %p118 = por %p116, %p117
      %p120 = scmp.ne.s32.totalorder %s105, %s119
      %p121 = scmp.eq.s32.totalorder %s27, 0
      %p122 = por %p120, %p121
      %s124 = sadd.s32 %s123, 1
      %p127 = scmp.eq.s32.totalorder %s21, 1
      %p128 = scmp.ne.s32.totalorder %s123, %s125
      %p129 = scmp.eq.s32.totalorder %s21, 0
      %p130 = por %p128, %p129
      %p131 = scmp.ne.s32.totalorder %s123, %s125
      %p132 = scmp.eq.s32.totalorder %s26, 1
      %p133 = por %p131, %p132
      %p134 = scmp.ne.s32.totalorder %s125, %s126
      %p135 = scmp.eq.s32.totalorder %s26, 0
      %p136 = por %p134, %p135
      %p137 = scmp.ne.s32.totalorder %s125, %s126
      %p138 = scmp.eq.s32.totalorder %s27, 1
      %p139 = por %p137, %p138
      %p141 = scmp.ne.s32.totalorder %s126, %s140
      %p142 = scmp.eq.s32.totalorder %s27, 0
      %p143 = por %p141, %p142
      %s144 = ssub.s32 %s21, %s28
      %p145 = scmp.eq.s32.totalorder %s144, 0
      %s147 = sadd.s32 %s146, 1
      %s148 = scalar_select %p145, %s146, %s147
      %p151 = pneg %p145
      %p152 = scmp.eq.s32.totalorder %s21, 1
      %p153 = por %p151, %p152
      %p154 = scmp.ne.s32.totalorder %s146, %s149
      %p155 = scmp.eq.s32.totalorder %s21, 0
      %p156 = por %p154, %p155
      %p157 = scmp.ne.s32.totalorder %s146, %s149
      %p158 = scmp.eq.s32.totalorder %s26, 1
      %p159 = por %p157, %p158
      %p160 = scmp.ne.s32.totalorder %s149, %s150
      %p161 = scmp.eq.s32.totalorder %s26, 0
      %p162 = por %p160, %p161
      %p163 = scmp.ne.s32.totalorder %s149, %s150
      %p164 = scmp.eq.s32.totalorder %s27, 1
      %p165 = por %p163, %p164
      %p167 = scmp.ne.s32.totalorder %s150, %s166
      %p168 = scmp.eq.s32.totalorder %s27, 0
      %p169 = por %p167, %p168
      %p170 = scmp.le.s32.totalorder 1, %s21
      %p171 = scmp.lt.s32.totalorder %s21, 3
      %p172 = pnand %p170, %p171
      %p173 = pneg %p172
      // Predicated region
      $region9: #{tpu_custom_call.1} parent=5 // pred_check
        _
      $region10: #{tpu_custom_call.1} parent=5 // pred_check_branch
        %175 = sbr.rel (%p172) target = $region12
      $region11: #{tpu_custom_call.1} parent=5 // pred_region
        %s176 = ssub.s32 %s21, 1
        // Predicated region
        $region13: #{tpu_custom_call.1} parent=11 // pred_check
          %p177 = pneg %p94
        $region14: #{tpu_custom_call.1} parent=11 // pred_check_branch
          %179 = sbr.rel (%p177) target = $region16
        $region15: #{tpu_custom_call.1} parent=11 // pred_region
          %s181 = ssub.s32 2048, 2048
          %182 = vsyncadd [#allocation6], %s181
          %s183 = sshll.u32 [#allocation7], 4
          %s184 = int_to_ptr.vmem [resolvable:$true] %s183
          %189 = dma.hbm_to_vmem [thread:$0]  %s2, 2048, %s184, [#allocation6], 128, 128, 8
        $region16: #{tpu_custom_call.1} parent=11 // pred_fallthru
          _
        // Predicated region
        $region17: #{tpu_custom_call.1} parent=11 // pred_check
          %p190 = pneg %p115
        $region18: #{tpu_custom_call.1} parent=11 // pred_check_branch
          %192 = sbr.rel (%p190) target = $region20
        $region19: #{tpu_custom_call.1} parent=11 // pred_region
          %s194 = ssub.s32 2048, 2048
          %195 = vsyncadd [#allocation9], %s194
          %s196 = sshll.u32 [#allocation8], 4
          %s197 = int_to_ptr.vmem [resolvable:$true] %s196
          %202 = dma.hbm_to_vmem [thread:$0]  %s3, 2048, %s197, [#allocation9], 128, 128, 8
        $region20: #{tpu_custom_call.1} parent=11 // pred_fallthru
          _
        // Predicated region
        $region21: #{tpu_custom_call.1} parent=11 // pred_check
          %p203 = pneg %p136
        $region22: #{tpu_custom_call.1} parent=11 // pred_check_branch
          %205 = sbr.rel (%p203) target = $region24
        $region23: #{tpu_custom_call.1} parent=11 // pred_region
          %s207 = ssub.s32 16, 16
          %208 = vsyncadd [#allocation9], %s207
          %s210 = sshll.u32 [#allocation10], 4
          %s211 = int_to_ptr.vmem [resolvable:$true] %s210
          %213 = dma.hbm_to_vmem [thread:$0]  %s4, 16, %s211, [#allocation9]
        $region24: #{tpu_custom_call.1} parent=11 // pred_fallthru
          _
      $region12: #{tpu_custom_call.1} parent=5 // pred_fallthru
        _
      %p214 = scmp.lt.s32.totalorder %s21, 2
      // Predicated region
      $region25: #{tpu_custom_call.1} parent=5 // pred_check
        %p215 = pneg %p214
      $region26: #{tpu_custom_call.1} parent=5 // pred_check_branch
        %217 = sbr.rel (%p215) target = $region28
      $region27: #{tpu_custom_call.1} parent=5 // pred_region
        // Predicated region
        $region29: #{tpu_custom_call.1} parent=27 // pred_check
          %p218 = pneg %p41
        $region30: #{tpu_custom_call.1} parent=27 // pred_check_branch
          %220 = sbr.rel (%p218) target = $region32
        $region31: #{tpu_custom_call.1} parent=27 // pred_region
          #allocation13 [shape = 'u32[6]{0}', space=smem, size = 0x18, scoped, tag = 'DMA stride descriptor']
          %s221 = sand.u32 %s31, 1
          %s222 = scalar_lea.sflag [#allocation3], %s221
          %s223 = sand.u32 %s31, 1
          %s224 = smul.addr %s223, 2048
          %s225 = scalar_lea.vmem [#allocation2], %s224
          %s226 = smul.u32 32, %s21
          %s228 = ssub.s32 32768, 32768
          %229 = vsyncadd %s222, %s228
          %s230 = smul.addr %s226, 128
          %s231 = scalar_lea.hbm %s0, %s230
          %s233 = sshll.u32 1, 14
          %s234 = sxor.u32 4294967295, %s233
          %s236 = sld [smem:[#allocation0]]
          %s237 = sadd.s32 2, %s236
          %s239 = sshll.u32 7, 26
          %s240 = sxor.u32 4294967295, %s239
          %s241 = sand.u32 0, %s240
          %s242 = sshll.u32 %s237, 26
          %s243 = sor.u32 %s241, %s242
          %s244 = sshll.u32 %s225, 4
          %s245 = int_to_ptr.vmem [resolvable:$true] %s244
          %251 = sst [smem:[#allocation13]] 8192
          %s252 = scalar_lea.smem [#allocation13], 1
          %253 = sst [smem:[%s252]] 4096
          %s254 = scalar_lea.smem [#allocation13], 2
          %255 = sst [smem:[%s254]] 32
          %s256 = scalar_lea.smem [#allocation13], 3
          %257 = sst [smem:[%s256]] 128
          %s258 = scalar_lea.smem [#allocation13], 4
          %259 = sst [smem:[%s258]] 128
          %s260 = scalar_lea.smem [#allocation13], 5
          %261 = sst [smem:[%s260]] 8
          %263 = dma.general %s231, 32768, %s245, %s222, [#allocation12], [#allocation13], %s243, 0
        $region32: #{tpu_custom_call.1} parent=27 // pred_fallthru
          _
        // Predicated region
        $region33: #{tpu_custom_call.1} parent=27 // pred_check
          %p264 = pneg %p67
        $region34: #{tpu_custom_call.1} parent=27 // pred_check_branch
          %266 = sbr.rel (%p264) target = $region36
        $region35: #{tpu_custom_call.1} parent=27 // pred_region
          %s267 = sand.u32 %s21, 1
          %s268 = scalar_lea.sflag [#allocation6], %s267
          %s269 = sand.u32 %s57, 1
          %s270 = smul.addr %s269, 256
          %s271 = scalar_lea.vmem [#allocation5], %s270
          %s272 = smul.u32 32, %s21
          %s274 = ssub.s32 4096, 4096
          %275 = vsyncadd %s268, %s274
          %s276 = smul.addr %s272, 128
          %s277 = scalar_lea.hbm %s1, %s276
          %s278 = sshll.u32 %s271, 4
          %s279 = int_to_ptr.vmem [resolvable:$true] %s278
          %284 = dma.hbm_to_vmem [thread:$0]  %s277, 4096, %s279, %s268, 128, 128, 8
        $region36: #{tpu_custom_call.1} parent=27 // pred_fallthru
          _
      $region28: #{tpu_custom_call.1} parent=5 // pred_fallthru
        _
      %p285 = scmp.le.s32.totalorder 1, %s21
      %p286 = scmp.lt.s32.totalorder %s21, 3
      %p287 = pnand %p285, %p286
      %p288 = pneg %p287
      // Predicated region
      $region37: #{tpu_custom_call.1} parent=5 // pred_check
        _
      $region38: #{tpu_custom_call.1} parent=5 // pred_check_branch
        %290 = sbr.rel (%p287) target = $region40
      $region39: #{tpu_custom_call.1} parent=5 // pred_region
        %s291 = ssub.s32 %s21, 1
        %s292 = sand.u32 %s34, 1
        %s293 = scalar_lea.sflag [#allocation3], %s292
        %s294 = sand.u32 %s34, 1
        %s295 = smul.addr %s294, 2048
        %s296 = scalar_lea.vmem [#allocation2], %s295
        // Predicated region
        $region41: #{tpu_custom_call.1} parent=39 // pred_check
          %p297 = pneg %p47
        $region42: #{tpu_custom_call.1} parent=39 // pred_check_branch
          %299 = sbr.rel (%p297) target = $region44
        $region43: #{tpu_custom_call.1} parent=39 // pred_region
          %300 = dma.done %s293, 32768
        $region44: #{tpu_custom_call.1} parent=39 // pred_fallthru
          _
        %s301 = sand.u32 %s26, 1
        %s302 = scalar_lea.sflag [#allocation6], %s301
        %s303 = sand.u32 %s60, 1
        %s304 = smul.addr %s303, 256
        %s305 = scalar_lea.vmem [#allocation5], %s304
        // Predicated region
        $region45: #{tpu_custom_call.1} parent=39 // pred_check
          %p306 = pneg %p73
        $region46: #{tpu_custom_call.1} parent=39 // pred_check_branch
          %308 = sbr.rel (%p306) target = $region48
        $region47: #{tpu_custom_call.1} parent=39 // pred_region
          %309 = dma.done %s302, 4096
        $region48: #{tpu_custom_call.1} parent=39 // pred_fallthru
          _
        // Predicated region
        $region49: #{tpu_custom_call.1} parent=39 // pred_check
          %p310 = pneg %p94
        $region50: #{tpu_custom_call.1} parent=39 // pred_check_branch
          %312 = sbr.rel (%p310) target = $region52
        $region51: #{tpu_custom_call.1} parent=39 // pred_region
          %313 = dma.done [#allocation6], 2048
        $region52: #{tpu_custom_call.1} parent=39 // pred_fallthru
          _
        // Predicated region
        $region53: #{tpu_custom_call.1} parent=39 // pred_check
          %p314 = pneg %p115
        $region54: #{tpu_custom_call.1} parent=39 // pred_check_branch
          %316 = sbr.rel (%p314) target = $region56
        $region55: #{tpu_custom_call.1} parent=39 // pred_region
          %317 = dma.done [#allocation9], 2048
        $region56: #{tpu_custom_call.1} parent=39 // pred_fallthru
          _
        // Predicated region
        $region57: #{tpu_custom_call.1} parent=39 // pred_check
          %p318 = pneg %p136
        $region58: #{tpu_custom_call.1} parent=39 // pred_check_branch
          %320 = sbr.rel (%p318) target = $region60
        $region59: #{tpu_custom_call.1} parent=39 // pred_region
          %321 = dma.done [#allocation9], 16
        $region60: #{tpu_custom_call.1} parent=39 // pred_fallthru
          _
        %s322 = sand.u32 %s34, 1
        %s323 = scalar_lea.sflag [#allocation3], %s322
        %s324 = sand.u32 %s34, 1
        %s325 = smul.addr %s324, 2048
        %s326 = scalar_lea.vmem [#allocation2], %s325
        %p327 = pneg %p47
        %p328 = pneg %p44
        %s329 = sand.u32 %s26, 1
        %s330 = scalar_lea.sflag [#allocation6], %s329
        %s331 = sand.u32 %s60, 1
        %s332 = smul.addr %s331, 256
        %s333 = scalar_lea.vmem [#allocation5], %s332
        %p334 = pneg %p73
        %p335 = pneg %p70
        %p336 = pneg %p94
        %p337 = pneg %p91
        %p338 = pneg %p115
        %p339 = pneg %p112
        %p340 = pneg %p136
        %p341 = pneg %p133
        %p342 = pneg %p162
        %p343 = pneg %p159
        %s344 = sand.u32 %s149, 1
        %s345 = scalar_lea.sflag [#allocation4], %s344
        %s346 = sand.u32 %s149, 1
        %s347 = smul.addr %s346, 256
        %s348 = scalar_lea.vmem [#allocation11], %s347
        %s349 = smul.u32 32, %s26
        %s350 = smul.u32 32, %s26
        %s351 = smul.u32 32, %s26
        %v352 = vld [vmem:[%s296] sm:$0xff]
        %v353 = vld [vmem:[%s296 + $0x8] sm:$0xff]
        %v354 = vld [vmem:[%s296 + $0x10] sm:$0xff]
        %v355 = vld [vmem:[%s296 + $0x18] sm:$0xff]
        %v356 = vld [vmem:[%s296 + $0x20] sm:$0xff]
        %v357 = vld [vmem:[%s296 + $0x28] sm:$0xff]
        %v358 = vld [vmem:[%s296 + $0x30] sm:$0xff]
        %v359 = vld [vmem:[%s296 + $0x38] sm:$0xff]
        %v360 = vld [vmem:[%s296 + $0x40] sm:$0xff]
        %v361 = vld [vmem:[%s296 + $0x48] sm:$0xff]
        %v362 = vld [vmem:[%s296 + $0x50] sm:$0xff]
        %v363 = vld [vmem:[%s296 + $0x58] sm:$0xff]
        %v364 = vld [vmem:[%s296 + $0x60] sm:$0xff]
        %v365 = vld [vmem:[%s296 + $0x68] sm:$0xff]
        %v366 = vld [vmem:[%s296 + $0x70] sm:$0xff]
        %v367 = vld [vmem:[%s296 + $0x78] sm:$0xff]
        %v368 = vld [vmem:[%s296 + $0x80] sm:$0xff]
        %v369 = vld [vmem:[%s296 + $0x88] sm:$0xff]
        %v370 = vld [vmem:[%s296 + $0x90] sm:$0xff]
        %v371 = vld [vmem:[%s296 + $0x98] sm:$0xff]
        %v372 = vld [vmem:[%s296 + $0xa0] sm:$0xff]
        %v373 = vld [vmem:[%s296 + $0xa8] sm:$0xff]
        %v374 = vld [vmem:[%s296 + $0xb0] sm:$0xff]
        %v375 = vld [vmem:[%s296 + $0xb8] sm:$0xff]
        %v376 = vld [vmem:[%s296 + $0xc0] sm:$0xff]
        %v377 = vld [vmem:[%s296 + $0xc8] sm:$0xff]
        %v378 = vld [vmem:[%s296 + $0xd0] sm:$0xff]
        %v379 = vld [vmem:[%s296 + $0xd8] sm:$0xff]
        %v380 = vld [vmem:[%s296 + $0xe0] sm:$0xff]
        %v381 = vld [vmem:[%s296 + $0xe8] sm:$0xff]
        %v382 = vld [vmem:[%s296 + $0xf0] sm:$0xff]
        %v383 = vld [vmem:[%s296 + $0xf8] sm:$0xff]
        %s384 = scalar_lea.vmem %s296, 256 [#allocation2]
        %v385 = vld [vmem:[%s384] sm:$0xff]
        %v386 = vld [vmem:[%s384 + $0x8] sm:$0xff]
        %v387 = vld [vmem:[%s384 + $0x10] sm:$0xff]
        %v388 = vld [vmem:[%s384 + $0x18] sm:$0xff]
        %v389 = vld [vmem:[%s384 + $0x20] sm:$0xff]
        %v390 = vld [vmem:[%s384 + $0x28] sm:$0xff]
        %v391 = vld [vmem:[%s384 + $0x30] sm:$0xff]
        %v392 = vld [vmem:[%s384 + $0x38] sm:$0xff]
        %v393 = vld [vmem:[%s384 + $0x40] sm:$0xff]
        %v394 = vld [vmem:[%s384 + $0x48] sm:$0xff]
        %v395 = vld [vmem:[%s384 + $0x50] sm:$0xff]
        %v396 = vld [vmem:[%s384 + $0x58] sm:$0xff]
        %v397 = vld [vmem:[%s384 + $0x60] sm:$0xff]
        %v398 = vld [vmem:[%s384 + $0x68] sm:$0xff]
        %v399 = vld [vmem:[%s384 + $0x70] sm:$0xff]
        %v400 = vld [vmem:[%s384 + $0x78] sm:$0xff]
        %v401 = vld [vmem:[%s384 + $0x80] sm:$0xff]
        %v402 = vld [vmem:[%s384 + $0x88] sm:$0xff]
        %v403 = vld [vmem:[%s384 + $0x90] sm:$0xff]
        %v404 = vld [vmem:[%s384 + $0x98] sm:$0xff]
        %v405 = vld [vmem:[%s384 + $0xa0] sm:$0xff]
        %v406 = vld [vmem:[%s384 + $0xa8] sm:$0xff]
        %v407 = vld [vmem:[%s384 + $0xb0] sm:$0xff]
        %v408 = vld [vmem:[%s384 + $0xb8] sm:$0xff]
        %v409 = vld [vmem:[%s384 + $0xc0] sm:$0xff]
        %v410 = vld [vmem:[%s384 + $0xc8] sm:$0xff]
        %v411 = vld [vmem:[%s384 + $0xd0] sm:$0xff]
        %v412 = vld [vmem:[%s384 + $0xd8] sm:$0xff]
        %v413 = vld [vmem:[%s384 + $0xe0] sm:$0xff]
        %v414 = vld [vmem:[%s384 + $0xe8] sm:$0xff]
        %v415 = vld [vmem:[%s384 + $0xf0] sm:$0xff]
        %v416 = vld [vmem:[%s384 + $0xf8] sm:$0xff]
        %v417 = vmax.f32 %v352, %v385
        %v418 = vmax.f32 %v353, %v386
        %v419 = vmax.f32 %v354, %v387
        %v420 = vmax.f32 %v355, %v388
        %v421 = vmax.f32 %v356, %v389
        %v422 = vmax.f32 %v357, %v390
        %v423 = vmax.f32 %v358, %v391
        %v424 = vmax.f32 %v359, %v392
        %v425 = vmax.f32 %v360, %v393
        %v426 = vmax.f32 %v361, %v394
        %v427 = vmax.f32 %v362, %v395
        %v428 = vmax.f32 %v363, %v396
        %v429 = vmax.f32 %v364, %v397
        %v430 = vmax.f32 %v365, %v398
        %v431 = vmax.f32 %v366, %v399
        %v432 = vmax.f32 %v367, %v400
        %v433 = vmax.f32 %v368, %v401
        %v434 = vmax.f32 %v369, %v402
        %v435 = vmax.f32 %v370, %v403
        %v436 = vmax.f32 %v371, %v404
        %v437 = vmax.f32 %v372, %v405
        %v438 = vmax.f32 %v373, %v406
        %v439 = vmax.f32 %v374, %v407
        %v440 = vmax.f32 %v375, %v408
        %v441 = vmax.f32 %v376, %v409
        %v442 = vmax.f32 %v377, %v410
        %v443 = vmax.f32 %v378, %v411
        %v444 = vmax.f32 %v379, %v412
        %v445 = vmax.f32 %v380, %v413
        %v446 = vmax.f32 %v381, %v414
        %v447 = vmax.f32 %v382, %v415
        %v448 = vmax.f32 %v383, %v416
        %s449 = scalar_lea.vmem %s296, 512 [#allocation2]
        %v450 = vld [vmem:[%s449] sm:$0xff]
        %v451 = vld [vmem:[%s449 + $0x8] sm:$0xff]
        %v452 = vld [vmem:[%s449 + $0x10] sm:$0xff]
        %v453 = vld [vmem:[%s449 + $0x18] sm:$0xff]
        %v454 = vld [vmem:[%s449 + $0x20] sm:$0xff]
        %v455 = vld [vmem:[%s449 + $0x28] sm:$0xff]
        %v456 = vld [vmem:[%s449 + $0x30] sm:$0xff]
        %v457 = vld [vmem:[%s449 + $0x38] sm:$0xff]
        %v458 = vld [vmem:[%s449 + $0x40] sm:$0xff]
        %v459 = vld [vmem:[%s449 + $0x48] sm:$0xff]
        %v460 = vld [vmem:[%s449 + $0x50] sm:$0xff]
        %v461 = vld [vmem:[%s449 + $0x58] sm:$0xff]
        %v462 = vld [vmem:[%s449 + $0x60] sm:$0xff]
        %v463 = vld [vmem:[%s449 + $0x68] sm:$0xff]
        %v464 = vld [vmem:[%s449 + $0x70] sm:$0xff]
        %v465 = vld [vmem:[%s449 + $0x78] sm:$0xff]
        %v466 = vld [vmem:[%s449 + $0x80] sm:$0xff]
        %v467 = vld [vmem:[%s449 + $0x88] sm:$0xff]
        %v468 = vld [vmem:[%s449 + $0x90] sm:$0xff]
        %v469 = vld [vmem:[%s449 + $0x98] sm:$0xff]
        %v470 = vld [vmem:[%s449 + $0xa0] sm:$0xff]
        %v471 = vld [vmem:[%s449 + $0xa8] sm:$0xff]
        %v472 = vld [vmem:[%s449 + $0xb0] sm:$0xff]
        %v473 = vld [vmem:[%s449 + $0xb8] sm:$0xff]
        %v474 = vld [vmem:[%s449 + $0xc0] sm:$0xff]
        %v475 = vld [vmem:[%s449 + $0xc8] sm:$0xff]
        %v476 = vld [vmem:[%s449 + $0xd0] sm:$0xff]
        %v477 = vld [vmem:[%s449 + $0xd8] sm:$0xff]
        %v478 = vld [vmem:[%s449 + $0xe0] sm:$0xff]
        %v479 = vld [vmem:[%s449 + $0xe8] sm:$0xff]
        %v480 = vld [vmem:[%s449 + $0xf0] sm:$0xff]
        %v481 = vld [vmem:[%s449 + $0xf8] sm:$0xff]
        %v482 = vmax.f32 %v417, %v450
        %v483 = vmax.f32 %v418, %v451
        %v484 = vmax.f32 %v419, %v452
        %v485 = vmax.f32 %v420, %v453
        %v486 = vmax.f32 %v421, %v454
        %v487 = vmax.f32 %v422, %v455
        %v488 = vmax.f32 %v423, %v456
        %v489 = vmax.f32 %v424, %v457
        %v490 = vmax.f32 %v425, %v458
        %v491 = vmax.f32 %v426, %v459
        %v492 = vmax.f32 %v427, %v460
        %v493 = vmax.f32 %v428, %v461
        %v494 = vmax.f32 %v429, %v462
        %v495 = vmax.f32 %v430, %v463
        %v496 = vmax.f32 %v431, %v464
        %v497 = vmax.f32 %v432, %v465
        %v498 = vmax.f32 %v433, %v466
        %v499 = vmax.f32 %v434, %v467
        %v500 = vmax.f32 %v435, %v468
        %v501 = vmax.f32 %v436, %v469
        %v502 = vmax.f32 %v437, %v470
        %v503 = vmax.f32 %v438, %v471
        %v504 = vmax.f32 %v439, %v472
        %v505 = vmax.f32 %v440, %v473
        %v506 = vmax.f32 %v441, %v474
        %v507 = vmax.f32 %v442, %v475
        %v508 = vmax.f32 %v443, %v476
        %v509 = vmax.f32 %v444, %v477
        %v510 = vmax.f32 %v445, %v478
        %v511 = vmax.f32 %v446, %v479
        %v512 = vmax.f32 %v447, %v480
        %v513 = vmax.f32 %v448, %v481
        %s514 = scalar_lea.vmem %s296, 768 [#allocation2]
        %v515 = vld [vmem:[%s514] sm:$0xff]
        %v516 = vld [vmem:[%s514 + $0x8] sm:$0xff]
        %v517 = vld [vmem:[%s514 + $0x10] sm:$0xff]
        %v518 = vld [vmem:[%s514 + $0x18] sm:$0xff]
        %v519 = vld [vmem:[%s514 + $0x20] sm:$0xff]
        %v520 = vld [vmem:[%s514 + $0x28] sm:$0xff]
        %v521 = vld [vmem:[%s514 + $0x30] sm:$0xff]
        %v522 = vld [vmem:[%s514 + $0x38] sm:$0xff]
        %v523 = vld [vmem:[%s514 + $0x40] sm:$0xff]
        %v524 = vld [vmem:[%s514 + $0x48] sm:$0xff]
        %v525 = vld [vmem:[%s514 + $0x50] sm:$0xff]
        %v526 = vld [vmem:[%s514 + $0x58] sm:$0xff]
        %v527 = vld [vmem:[%s514 + $0x60] sm:$0xff]
        %v528 = vld [vmem:[%s514 + $0x68] sm:$0xff]
        %v529 = vld [vmem:[%s514 + $0x70] sm:$0xff]
        %v530 = vld [vmem:[%s514 + $0x78] sm:$0xff]
        %v531 = vld [vmem:[%s514 + $0x80] sm:$0xff]
        %v532 = vld [vmem:[%s514 + $0x88] sm:$0xff]
        %v533 = vld [vmem:[%s514 + $0x90] sm:$0xff]
        %v534 = vld [vmem:[%s514 + $0x98] sm:$0xff]
        %v535 = vld [vmem:[%s514 + $0xa0] sm:$0xff]
        %v536 = vld [vmem:[%s514 + $0xa8] sm:$0xff]
        %v537 = vld [vmem:[%s514 + $0xb0] sm:$0xff]
        %v538 = vld [vmem:[%s514 + $0xb8] sm:$0xff]
        %v539 = vld [vmem:[%s514 + $0xc0] sm:$0xff]
        %v540 = vld [vmem:[%s514 + $0xc8] sm:$0xff]
        %v541 = vld [vmem:[%s514 + $0xd0] sm:$0xff]
        %v542 = vld [vmem:[%s514 + $0xd8] sm:$0xff]
        %v543 = vld [vmem:[%s514 + $0xe0] sm:$0xff]
        %v544 = vld [vmem:[%s514 + $0xe8] sm:$0xff]
        %v545 = vld [vmem:[%s514 + $0xf0] sm:$0xff]
        %v546 = vld [vmem:[%s514 + $0xf8] sm:$0xff]
        %v547 = vmax.f32 %v482, %v515
        %v548 = vmax.f32 %v483, %v516
        %v549 = vmax.f32 %v484, %v517
        %v550 = vmax.f32 %v485, %v518
        %v551 = vmax.f32 %v486, %v519
        %v552 = vmax.f32 %v487, %v520
        %v553 = vmax.f32 %v488, %v521
        %v554 = vmax.f32 %v489, %v522
        %v555 = vmax.f32 %v490, %v523
        %v556 = vmax.f32 %v491, %v524
        %v557 = vmax.f32 %v492, %v525
        %v558 = vmax.f32 %v493, %v526
        %v559 = vmax.f32 %v494, %v527
        %v560 = vmax.f32 %v495, %v528
        %v561 = vmax.f32 %v496, %v529
        %v562 = vmax.f32 %v497, %v530
        %v563 = vmax.f32 %v498, %v531
        %v564 = vmax.f32 %v499, %v532
        %v565 = vmax.f32 %v500, %v533
        %v566 = vmax.f32 %v501, %v534
        %v567 = vmax.f32 %v502, %v535
        %v568 = vmax.f32 %v503, %v536
        %v569 = vmax.f32 %v504, %v537
        %v570 = vmax.f32 %v505, %v538
        %v571 = vmax.f32 %v506, %v539
        %v572 = vmax.f32 %v507, %v540
        %v573 = vmax.f32 %v508, %v541
        %v574 = vmax.f32 %v509, %v542
        %v575 = vmax.f32 %v510, %v543
        %v576 = vmax.f32 %v511, %v544
        %v577 = vmax.f32 %v512, %v545
        %v578 = vmax.f32 %v513, %v546
        %s579 = scalar_lea.vmem %s296, 1024 [#allocation2]
        %v580 = vld [vmem:[%s579] sm:$0xff]
        %v581 = vld [vmem:[%s579 + $0x8] sm:$0xff]
        %v582 = vld [vmem:[%s579 + $0x10] sm:$0xff]
        %v583 = vld [vmem:[%s579 + $0x18] sm:$0xff]
        %v584 = vld [vmem:[%s579 + $0x20] sm:$0xff]
        %v585 = vld [vmem:[%s579 + $0x28] sm:$0xff]
        %v586 = vld [vmem:[%s579 + $0x30] sm:$0xff]
        %v587 = vld [vmem:[%s579 + $0x38] sm:$0xff]
        %v588 = vld [vmem:[%s579 + $0x40] sm:$0xff]
        %v589 = vld [vmem:[%s579 + $0x48] sm:$0xff]
        %v590 = vld [vmem:[%s579 + $0x50] sm:$0xff]
        %v591 = vld [vmem:[%s579 + $0x58] sm:$0xff]
        %v592 = vld [vmem:[%s579 + $0x60] sm:$0xff]
        %v593 = vld [vmem:[%s579 + $0x68] sm:$0xff]
        %v594 = vld [vmem:[%s579 + $0x70] sm:$0xff]
        %v595 = vld [vmem:[%s579 + $0x78] sm:$0xff]
        %v596 = vld [vmem:[%s579 + $0x80] sm:$0xff]
        %v597 = vld [vmem:[%s579 + $0x88] sm:$0xff]
        %v598 = vld [vmem:[%s579 + $0x90] sm:$0xff]
        %v599 = vld [vmem:[%s579 + $0x98] sm:$0xff]
        %v600 = vld [vmem:[%s579 + $0xa0] sm:$0xff]
        %v601 = vld [vmem:[%s579 + $0xa8] sm:$0xff]
        %v602 = vld [vmem:[%s579 + $0xb0] sm:$0xff]
        %v603 = vld [vmem:[%s579 + $0xb8] sm:$0xff]
        %v604 = vld [vmem:[%s579 + $0xc0] sm:$0xff]
        %v605 = vld [vmem:[%s579 + $0xc8] sm:$0xff]
        %v606 = vld [vmem:[%s579 + $0xd0] sm:$0xff]
        %v607 = vld [vmem:[%s579 + $0xd8] sm:$0xff]
        %v608 = vld [vmem:[%s579 + $0xe0] sm:$0xff]
        %v609 = vld [vmem:[%s579 + $0xe8] sm:$0xff]
        %v610 = vld [vmem:[%s579 + $0xf0] sm:$0xff]
        %v611 = vld [vmem:[%s579 + $0xf8] sm:$0xff]
        %v612 = vmax.f32 %v547, %v580
        %v613 = vmax.f32 %v548, %v581
        %v614 = vmax.f32 %v549, %v582
        %v615 = vmax.f32 %v550, %v583
        %v616 = vmax.f32 %v551, %v584
        %v617 = vmax.f32 %v552, %v585
        %v618 = vmax.f32 %v553, %v586
        %v619 = vmax.f32 %v554, %v587
        %v620 = vmax.f32 %v555, %v588
        %v621 = vmax.f32 %v556, %v589
        %v622 = vmax.f32 %v557, %v590
        %v623 = vmax.f32 %v558, %v591
        %v624 = vmax.f32 %v559, %v592
        %v625 = vmax.f32 %v560, %v593
        %v626 = vmax.f32 %v561, %v594
        %v627 = vmax.f32 %v562, %v595
        %v628 = vmax.f32 %v563, %v596
        %v629 = vmax.f32 %v564, %v597
        %v630 = vmax.f32 %v565, %v598
        %v631 = vmax.f32 %v566, %v599
        %v632 = vmax.f32 %v567, %v600
        %v633 = vmax.f32 %v568, %v601
        %v634 = vmax.f32 %v569, %v602
        %v635 = vmax.f32 %v570, %v603
        %v636 = vmax.f32 %v571, %v604
        %v637 = vmax.f32 %v572, %v605
        %v638 = vmax.f32 %v573, %v606
        %v639 = vmax.f32 %v574, %v607
        %v640 = vmax.f32 %v575, %v608
        %v641 = vmax.f32 %v576, %v609
        %v642 = vmax.f32 %v577, %v610
        %v643 = vmax.f32 %v578, %v611
        %s644 = scalar_lea.vmem %s296, 1280 [#allocation2]
        %v645 = vld [vmem:[%s644] sm:$0xff]
        %v646 = vld [vmem:[%s644 + $0x8] sm:$0xff]
        %v647 = vld [vmem:[%s644 + $0x10] sm:$0xff]
        %v648 = vld [vmem:[%s644 + $0x18] sm:$0xff]
        %v649 = vld [vmem:[%s644 + $0x20] sm:$0xff]
        %v650 = vld [vmem:[%s644 + $0x28] sm:$0xff]
        %v651 = vld [vmem:[%s644 + $0x30] sm:$0xff]
        %v652 = vld [vmem:[%s644 + $0x38] sm:$0xff]
        %v653 = vld [vmem:[%s644 + $0x40] sm:$0xff]
        %v654 = vld [vmem:[%s644 + $0x48] sm:$0xff]
        %v655 = vld [vmem:[%s644 + $0x50] sm:$0xff]
        %v656 = vld [vmem:[%s644 + $0x58] sm:$0xff]
        %v657 = vld [vmem:[%s644 + $0x60] sm:$0xff]
        %v658 = vld [vmem:[%s644 + $0x68] sm:$0xff]
        %v659 = vld [vmem:[%s644 + $0x70] sm:$0xff]
        %v660 = vld [vmem:[%s644 + $0x78] sm:$0xff]
        %v661 = vld [vmem:[%s644 + $0x80] sm:$0xff]
        %v662 = vld [vmem:[%s644 + $0x88] sm:$0xff]
        %v663 = vld [vmem:[%s644 + $0x90] sm:$0xff]
        %v664 = vld [vmem:[%s644 + $0x98] sm:$0xff]
        %v665 = vld [vmem:[%s644 + $0xa0] sm:$0xff]
        %v666 = vld [vmem:[%s644 + $0xa8] sm:$0xff]
        %v667 = vld [vmem:[%s644 + $0xb0] sm:$0xff]
        %v668 = vld [vmem:[%s644 + $0xb8] sm:$0xff]
        %v669 = vld [vmem:[%s644 + $0xc0] sm:$0xff]
        %v670 = vld [vmem:[%s644 + $0xc8] sm:$0xff]
        %v671 = vld [vmem:[%s644 + $0xd0] sm:$0xff]
        %v672 = vld [vmem:[%s644 + $0xd8] sm:$0xff]
        %v673 = vld [vmem:[%s644 + $0xe0] sm:$0xff]
        %v674 = vld [vmem:[%s644 + $0xe8] sm:$0xff]
        %v675 = vld [vmem:[%s644 + $0xf0] sm:$0xff]
        %v676 = vld [vmem:[%s644 + $0xf8] sm:$0xff]
        %v677 = vmax.f32 %v612, %v645
        %v678 = vmax.f32 %v613, %v646
        %v679 = vmax.f32 %v614, %v647
        %v680 = vmax.f32 %v615, %v648
        %v681 = vmax.f32 %v616, %v649
        %v682 = vmax.f32 %v617, %v650
        %v683 = vmax.f32 %v618, %v651
        %v684 = vmax.f32 %v619, %v652
        %v685 = vmax.f32 %v620, %v653
        %v686 = vmax.f32 %v621, %v654
        %v687 = vmax.f32 %v622, %v655
        %v688 = vmax.f32 %v623, %v656
        %v689 = vmax.f32 %v624, %v657
        %v690 = vmax.f32 %v625, %v658
        %v691 = vmax.f32 %v626, %v659
        %v692 = vmax.f32 %v627, %v660
        %v693 = vmax.f32 %v628, %v661
        %v694 = vmax.f32 %v629, %v662
        %v695 = vmax.f32 %v630, %v663
        %v696 = vmax.f32 %v631, %v664
        %v697 = vmax.f32 %v632, %v665
        %v698 = vmax.f32 %v633, %v666
        %v699 = vmax.f32 %v634, %v667
        %v700 = vmax.f32 %v635, %v668
        %v701 = vmax.f32 %v636, %v669
        %v702 = vmax.f32 %v637, %v670
        %v703 = vmax.f32 %v638, %v671
        %v704 = vmax.f32 %v639, %v672
        %v705 = vmax.f32 %v640, %v673
        %v706 = vmax.f32 %v641, %v674
        %v707 = vmax.f32 %v642, %v675
        %v708 = vmax.f32 %v643, %v676
        %s709 = scalar_lea.vmem %s296, 1536 [#allocation2]
        %v710 = vld [vmem:[%s709] sm:$0xff]
        %v711 = vld [vmem:[%s709 + $0x8] sm:$0xff]
        %v712 = vld [vmem:[%s709 + $0x10] sm:$0xff]
        %v713 = vld [vmem:[%s709 + $0x18] sm:$0xff]
        %v714 = vld [vmem:[%s709 + $0x20] sm:$0xff]
        %v715 = vld [vmem:[%s709 + $0x28] sm:$0xff]
        %v716 = vld [vmem:[%s709 + $0x30] sm:$0xff]
        %v717 = vld [vmem:[%s709 + $0x38] sm:$0xff]
        %v718 = vld [vmem:[%s709 + $0x40] sm:$0xff]
        %v719 = vld [vmem:[%s709 + $0x48] sm:$0xff]
        %v720 = vld [vmem:[%s709 + $0x50] sm:$0xff]
        %v721 = vld [vmem:[%s709 + $0x58] sm:$0xff]
        %v722 = vld [vmem:[%s709 + $0x60] sm:$0xff]
        %v723 = vld [vmem:[%s709 + $0x68] sm:$0xff]
        %v724 = vld [vmem:[%s709 + $0x70] sm:$0xff]
        %v725 = vld [vmem:[%s709 + $0x78] sm:$0xff]
        %v726 = vld [vmem:[%s709 + $0x80] sm:$0xff]
        %v727 = vld [vmem:[%s709 + $0x88] sm:$0xff]
        %v728 = vld [vmem:[%s709 + $0x90] sm:$0xff]
        %v729 = vld [vmem:[%s709 + $0x98] sm:$0xff]
        %v730 = vld [vmem:[%s709 + $0xa0] sm:$0xff]
        %v731 = vld [vmem:[%s709 + $0xa8] sm:$0xff]
        %v732 = vld [vmem:[%s709 + $0xb0] sm:$0xff]
        %v733 = vld [vmem:[%s709 + $0xb8] sm:$0xff]
        %v734 = vld [vmem:[%s709 + $0xc0] sm:$0xff]
        %v735 = vld [vmem:[%s709 + $0xc8] sm:$0xff]
        %v736 = vld [vmem:[%s709 + $0xd0] sm:$0xff]
        %v737 = vld [vmem:[%s709 + $0xd8] sm:$0xff]
        %v738 = vld [vmem:[%s709 + $0xe0] sm:$0xff]
        %v739 = vld [vmem:[%s709 + $0xe8] sm:$0xff]
        %v740 = vld [vmem:[%s709 + $0xf0] sm:$0xff]
        %v741 = vld [vmem:[%s709 + $0xf8] sm:$0xff]
        %v742 = vmax.f32 %v677, %v710
        %v743 = vmax.f32 %v678, %v711
        %v744 = vmax.f32 %v679, %v712
        %v745 = vmax.f32 %v680, %v713
        %v746 = vmax.f32 %v681, %v714
        %v747 = vmax.f32 %v682, %v715
        %v748 = vmax.f32 %v683, %v716
        %v749 = vmax.f32 %v684, %v717
        %v750 = vmax.f32 %v685, %v718
        %v751 = vmax.f32 %v686, %v719
        %v752 = vmax.f32 %v687, %v720
        %v753 = vmax.f32 %v688, %v721
        %v754 = vmax.f32 %v689, %v722
        %v755 = vmax.f32 %v690, %v723
        %v756 = vmax.f32 %v691, %v724
        %v757 = vmax.f32 %v692, %v725
        %v758 = vmax.f32 %v693, %v726
        %v759 = vmax.f32 %v694, %v727
        %v760 = vmax.f32 %v695, %v728
        %v761 = vmax.f32 %v696, %v729
        %v762 = vmax.f32 %v697, %v730
        %v763 = vmax.f32 %v698, %v731
        %v764 = vmax.f32 %v699, %v732
        %v765 = vmax.f32 %v700, %v733
        %v766 = vmax.f32 %v701, %v734
        %v767 = vmax.f32 %v702, %v735
        %v768 = vmax.f32 %v703, %v736
        %v769 = vmax.f32 %v704, %v737
        %v770 = vmax.f32 %v705, %v738
        %v771 = vmax.f32 %v706, %v739
        %v772 = vmax.f32 %v707, %v740
        %v773 = vmax.f32 %v708, %v741
        %s774 = scalar_lea.vmem %s296, 1792 [#allocation2]
        %v775 = vld [vmem:[%s774] sm:$0xff]
        %v776 = vld [vmem:[%s774 + $0x8] sm:$0xff]
        %v777 = vld [vmem:[%s774 + $0x10] sm:$0xff]
        %v778 = vld [vmem:[%s774 + $0x18] sm:$0xff]
        %v779 = vld [vmem:[%s774 + $0x20] sm:$0xff]
        %v780 = vld [vmem:[%s774 + $0x28] sm:$0xff]
        %v781 = vld [vmem:[%s774 + $0x30] sm:$0xff]
        %v782 = vld [vmem:[%s774 + $0x38] sm:$0xff]
        %v783 = vld [vmem:[%s774 + $0x40] sm:$0xff]
        %v784 = vld [vmem:[%s774 + $0x48] sm:$0xff]
        %v785 = vld [vmem:[%s774 + $0x50] sm:$0xff]
        %v786 = vld [vmem:[%s774 + $0x58] sm:$0xff]
        %v787 = vld [vmem:[%s774 + $0x60] sm:$0xff]
        %v788 = vld [vmem:[%s774 + $0x68] sm:$0xff]
        %v789 = vld [vmem:[%s774 + $0x70] sm:$0xff]
        %v790 = vld [vmem:[%s774 + $0x78] sm:$0xff]
        %v791 = vld [vmem:[%s774 + $0x80] sm:$0xff]
        %v792 = vld [vmem:[%s774 + $0x88] sm:$0xff]
        %v793 = vld [vmem:[%s774 + $0x90] sm:$0xff]
        %v794 = vld [vmem:[%s774 + $0x98] sm:$0xff]
        %v795 = vld [vmem:[%s774 + $0xa0] sm:$0xff]
        %v796 = vld [vmem:[%s774 + $0xa8] sm:$0xff]
        %v797 = vld [vmem:[%s774 + $0xb0] sm:$0xff]
        %v798 = vld [vmem:[%s774 + $0xb8] sm:$0xff]
        %v799 = vld [vmem:[%s774 + $0xc0] sm:$0xff]
        %v800 = vld [vmem:[%s774 + $0xc8] sm:$0xff]
        %v801 = vld [vmem:[%s774 + $0xd0] sm:$0xff]
        %v802 = vld [vmem:[%s774 + $0xd8] sm:$0xff]
        %v803 = vld [vmem:[%s774 + $0xe0] sm:$0xff]
        %v804 = vld [vmem:[%s774 + $0xe8] sm:$0xff]
        %v805 = vld [vmem:[%s774 + $0xf0] sm:$0xff]
        %v806 = vld [vmem:[%s774 + $0xf8] sm:$0xff]
        %v807 = vmax.f32 %v742, %v775
        %v808 = vmax.f32 %v743, %v776
        %v809 = vmax.f32 %v744, %v777
        %v810 = vmax.f32 %v745, %v778
        %v811 = vmax.f32 %v746, %v779
        %v812 = vmax.f32 %v747, %v780
        %v813 = vmax.f32 %v748, %v781
        %v814 = vmax.f32 %v749, %v782
        %v815 = vmax.f32 %v750, %v783
        %v816 = vmax.f32 %v751, %v784
        %v817 = vmax.f32 %v752, %v785
        %v818 = vmax.f32 %v753, %v786
        %v819 = vmax.f32 %v754, %v787
        %v820 = vmax.f32 %v755, %v788
        %v821 = vmax.f32 %v756, %v789
        %v822 = vmax.f32 %v757, %v790
        %v823 = vmax.f32 %v758, %v791
        %v824 = vmax.f32 %v759, %v792
        %v825 = vmax.f32 %v760, %v793
        %v826 = vmax.f32 %v761, %v794
        %v827 = vmax.f32 %v762, %v795
        %v828 = vmax.f32 %v763, %v796
        %v829 = vmax.f32 %v764, %v797
        %v830 = vmax.f32 %v765, %v798
        %v831 = vmax.f32 %v766, %v799
        %v832 = vmax.f32 %v767, %v800
        %v833 = vmax.f32 %v768, %v801
        %v834 = vmax.f32 %v769, %v802
        %v835 = vmax.f32 %v770, %v803
        %v836 = vmax.f32 %v771, %v804
        %v837 = vmax.f32 %v772, %v805
        %v838 = vmax.f32 %v773, %v806
        %v839 = vld [vmem:[%s305] sm:$0xff]
        %v840 = vld [vmem:[%s305 + $0x8] sm:$0xff]
        %v841 = vld [vmem:[%s305 + $0x10] sm:$0xff]
        %v842 = vld [vmem:[%s305 + $0x18] sm:$0xff]
        %v843 = vld [vmem:[%s305 + $0x20] sm:$0xff]
        %v844 = vld [vmem:[%s305 + $0x28] sm:$0xff]
        %v845 = vld [vmem:[%s305 + $0x30] sm:$0xff]
        %v846 = vld [vmem:[%s305 + $0x38] sm:$0xff]
        %v847 = vld [vmem:[%s305 + $0x40] sm:$0xff]
        %v848 = vld [vmem:[%s305 + $0x48] sm:$0xff]
        %v849 = vld [vmem:[%s305 + $0x50] sm:$0xff]
        %v850 = vld [vmem:[%s305 + $0x58] sm:$0xff]
        %v851 = vld [vmem:[%s305 + $0x60] sm:$0xff]
        %v852 = vld [vmem:[%s305 + $0x68] sm:$0xff]
        %v853 = vld [vmem:[%s305 + $0x70] sm:$0xff]
        %v854 = vld [vmem:[%s305 + $0x78] sm:$0xff]
        %v855 = vld [vmem:[%s305 + $0x80] sm:$0xff]
        %v856 = vld [vmem:[%s305 + $0x88] sm:$0xff]
        %v857 = vld [vmem:[%s305 + $0x90] sm:$0xff]
        %v858 = vld [vmem:[%s305 + $0x98] sm:$0xff]
        %v859 = vld [vmem:[%s305 + $0xa0] sm:$0xff]
        %v860 = vld [vmem:[%s305 + $0xa8] sm:$0xff]
        %v861 = vld [vmem:[%s305 + $0xb0] sm:$0xff]
        %v862 = vld [vmem:[%s305 + $0xb8] sm:$0xff]
        %v863 = vld [vmem:[%s305 + $0xc0] sm:$0xff]
        %v864 = vld [vmem:[%s305 + $0xc8] sm:$0xff]
        %v865 = vld [vmem:[%s305 + $0xd0] sm:$0xff]
        %v866 = vld [vmem:[%s305 + $0xd8] sm:$0xff]
        %v867 = vld [vmem:[%s305 + $0xe0] sm:$0xff]
        %v868 = vld [vmem:[%s305 + $0xe8] sm:$0xff]
        %v869 = vld [vmem:[%s305 + $0xf0] sm:$0xff]
        %v870 = vld [vmem:[%s305 + $0xf8] sm:$0xff]
        %v871 = vld [vmem:[#allocation7] sm:$0xff]
        %v872 = vld [vmem:[#allocation7 + $0x8] sm:$0xff]
        %v873 = vld [vmem:[#allocation7 + $0x10] sm:$0xff]
        %v874 = vld [vmem:[#allocation7 + $0x18] sm:$0xff]
        %v875 = vld [vmem:[#allocation7 + $0x20] sm:$0xff]
        %v876 = vld [vmem:[#allocation7 + $0x28] sm:$0xff]
        %v877 = vld [vmem:[#allocation7 + $0x30] sm:$0xff]
        %v878 = vld [vmem:[#allocation7 + $0x38] sm:$0xff]
        %v879 = vld [vmem:[#allocation7 + $0x40] sm:$0xff]
        %v880 = vld [vmem:[#allocation7 + $0x48] sm:$0xff]
        %v881 = vld [vmem:[#allocation7 + $0x50] sm:$0xff]
        %v882 = vld [vmem:[#allocation7 + $0x58] sm:$0xff]
        %v883 = vld [vmem:[#allocation7 + $0x60] sm:$0xff]
        %v884 = vld [vmem:[#allocation7 + $0x68] sm:$0xff]
        %v885 = vld [vmem:[#allocation7 + $0x70] sm:$0xff]
        %v886 = vld [vmem:[#allocation7 + $0x78] sm:$0xff]
        %v887 = vld [vmem:[#allocation8] sm:$0xff]
        %v888 = vld [vmem:[#allocation8 + $0x8] sm:$0xff]
        %v889 = vld [vmem:[#allocation8 + $0x10] sm:$0xff]
        %v890 = vld [vmem:[#allocation8 + $0x18] sm:$0xff]
        %v891 = vld [vmem:[#allocation8 + $0x20] sm:$0xff]
        %v892 = vld [vmem:[#allocation8 + $0x28] sm:$0xff]
        %v893 = vld [vmem:[#allocation8 + $0x30] sm:$0xff]
        %v894 = vld [vmem:[#allocation8 + $0x38] sm:$0xff]
        %v895 = vld [vmem:[#allocation8 + $0x40] sm:$0xff]
        %v896 = vld [vmem:[#allocation8 + $0x48] sm:$0xff]
        %v897 = vld [vmem:[#allocation8 + $0x50] sm:$0xff]
        %v898 = vld [vmem:[#allocation8 + $0x58] sm:$0xff]
        %v899 = vld [vmem:[#allocation8 + $0x60] sm:$0xff]
        %v900 = vld [vmem:[#allocation8 + $0x68] sm:$0xff]
        %v901 = vld [vmem:[#allocation8 + $0x70] sm:$0xff]
        %v902 = vld [vmem:[#allocation8 + $0x78] sm:$0xff]
        %903 = vmatprep.subr.mxu0 0.0
        %904 = vmatpush1.msra.mxu0 %v887
        %905 = vmatprep.subr.mxu0 0.0
        %906 = vmatpush1.msra.mxu0 %v888
        %907 = vmatprep.subr.mxu0 0.0
        %908 = vmatpush1.msra.mxu0 %v889
        %909 = vmatprep.subr.mxu0 0.0
        %910 = vmatpush1.msra.mxu0 %v890
        %911 = vmatprep.subr.mxu0 0.0
        %912 = vmatpush1.msra.mxu0 %v891
        %913 = vmatprep.subr.mxu0 0.0
        %914 = vmatpush1.msra.mxu0 %v892
        %915 = vmatprep.subr.mxu0 0.0
        %916 = vmatpush1.msra.mxu0 %v893
        %917 = vmatprep.subr.mxu0 0.0
        %918 = vmatpush1.msra.mxu0 %v894
        %919 = vmatprep.subr.mxu0 0.0
        %920 = vmatpush1.msra.mxu0 %v895
        %921 = vmatprep.subr.mxu0 0.0
        %922 = vmatpush1.msra.mxu0 %v896
        %923 = vmatprep.subr.mxu0 0.0
        %924 = vmatpush1.msra.mxu0 %v897
        %925 = vmatprep.subr.mxu0 0.0
        %926 = vmatpush1.msra.mxu0 %v898
        %927 = vmatprep.subr.mxu0 0.0
        %928 = vmatpush1.msra.mxu0 %v899
        %929 = vmatprep.subr.mxu0 0.0
        %930 = vmatpush1.msra.mxu0 %v900
        %931 = vmatprep.subr.mxu0 0.0
        %932 = vmatpush1.msra.mxu0 %v901
        %933 = vmatprep.subr.mxu0 0.0
        %934 = vmatpush1.msra.mxu0 %v902
        %935 = vmatprep.subr.mxu0 0.0
        %936 = vmatpush1.msra.mxu0 0.0
        %937 = vmatprep.subr.mxu0 0.0
        %938 = vmatpush1.msra.mxu0 0.0
        %939 = vmatprep.subr.mxu0 0.0
        %940 = vmatpush1.msra.mxu0 0.0
        %941 = vmatprep.subr.mxu0 0.0
        %942 = vmatpush1.msra.mxu0 0.0
        %943 = vmatprep.subr.mxu0 0.0
        %944 = vmatpush1.msra.mxu0 0.0
        %945 = vmatprep.subr.mxu0 0.0
        %946 = vmatpush1.msra.mxu0 0.0
        %947 = vmatprep.subr.mxu0 0.0
        %948 = vmatpush1.msra.mxu0 0.0
        %949 = vmatprep.subr.mxu0 0.0
        %950 = vmatpush1.msra.mxu0 0.0
        %951 = vmatprep.subr.mxu0 0.0
        %952 = vmatpush1.msra.mxu0 0.0
        %953 = vmatprep.subr.mxu0 0.0
        %954 = vmatpush1.msra.mxu0 0.0
        %955 = vmatprep.subr.mxu0 0.0
        %956 = vmatpush1.msra.mxu0 0.0
        %957 = vmatprep.subr.mxu0 0.0
        %958 = vmatpush1.msra.mxu0 0.0
        %959 = vmatprep.subr.mxu0 0.0
        %960 = vmatpush1.msra.mxu0 0.0
        %961 = vmatprep.subr.mxu0 0.0
        %962 = vmatpush1.msra.mxu0 0.0
        %963 = vmatprep.subr.mxu0 0.0
        %964 = vmatpush1.msra.mxu0 0.0
        %965 = vmatprep.subr.mxu0 0.0
        %966 = vmatpush1.msra.mxu0 0.0
        %967 = vmatprep.mubr.f32.mxu0 0.0
        %968 = vmatmul.mubr.f32.gmra.mrb[0].mxu0 %v839
        %v969 = vpop.f32.mrb[0].mxu0
        %v970 = vadd.f32 0.0, %v969
        %v971 = vpop.f32.mrb[0].mxu0
        %972 = vmatprep.mubr.f32.mxu0 0.0
        %973 = vmatmul.mubr.f32.gmra.mrb[0].mxu0 %v840
        %v974 = vpop.f32.mrb[0].mxu0
        %v975 = vadd.f32 0.0, %v974
        %v976 = vpop.f32.mrb[0].mxu0
        %977 = vmatprep.mubr.f32.mxu0 0.0
        %978 = vmatmul.mubr.f32.gmra.mrb[0].mxu0 %v841
        %v979 = vpop.f32.mrb[0].mxu0
        %v980 = vadd.f32 0.0, %v979
        %v981 = vpop.f32.mrb[0].mxu0
        %982 = vmatprep.mubr.f32.mxu0 0.0
        %983 = vmatmul.mubr.f32.gmra.mrb[0].mxu0 %v842
        %v984 = vpop.f32.mrb[0].mxu0
        %v985 = vadd.f32 0.0, %v984
        %v986 = vpop.f32.mrb[0].mxu0
        %987 = vmatprep.mubr.f32.mxu0 0.0
        %988 = vmatmul.mubr.f32.gmra.mrb[0].mxu0 %v843
        %v989 = vpop.f32.mrb[0].mxu0
        %v990 = vadd.f32 0.0, %v989
        %v991 = vpop.f32.mrb[0].mxu0
        %992 = vmatprep.mubr.f32.mxu0 0.0
        %993 = vmatmul.mubr.f32.gmra.mrb[0].mxu0 %v844
        %v994 = vpop.f32.mrb[0].mxu0
        %v995 = vadd.f32 0.0, %v994
        %v996 = vpop.f32.mrb[0].mxu0
        %997 = vmatprep.mubr.f32.mxu0 0.0
        %998 = vmatmul.mubr.f32.gmra.mrb[0].mxu0 %v845
        %v999 = vpop.f32.mrb[0].mxu0
        %v1000 = vadd.f32 0.0, %v999
        %v1001 = vpop.f32.mrb[0].mxu0
        %1002 = vmatprep.mubr.f32.mxu0 0.0
        %1003 = vmatmul.mubr.f32.gmra.mrb[0].mxu0 %v846
        %v1004 = vpop.f32.mrb[0].mxu0
        %v1005 = vadd.f32 0.0, %v1004
        %v1006 = vpop.f32.mrb[0].mxu0
        %1007 = vmatprep.mubr.f32.mxu0 0.0
        %1008 = vmatmul.mubr.f32.gmra.mrb[0].mxu0 %v847
        %v1009 = vpop.f32.mrb[0].mxu0
        %v1010 = vadd.f32 0.0, %v1009
        %v1011 = vpop.f32.mrb[0].mxu0
        %1012 = vmatprep.mubr.f32.mxu0 0.0
        %1013 = vmatmul.mubr.f32.gmra.mrb[0].mxu0 %v848
        %v1014 = vpop.f32.mrb[0].mxu0
        %v1015 = vadd.f32 0.0, %v1014
        %v1016 = vpop.f32.mrb[0].mxu0
        %1017 = vmatprep.mubr.f32.mxu0 0.0
        %1018 = vmatmul.mubr.f32.gmra.mrb[0].mxu0 %v849
        %v1019 = vpop.f32.mrb[0].mxu0
        %v1020 = vadd.f32 0.0, %v1019
        %v1021 = vpop.f32.mrb[0].mxu0
        %1022 = vmatprep.mubr.f32.mxu0 0.0
        %1023 = vmatmul.mubr.f32.gmra.mrb[0].mxu0 %v850
        %v1024 = vpop.f32.mrb[0].mxu0
        %v1025 = vadd.f32 0.0, %v1024
        %v1026 = vpop.f32.mrb[0].mxu0
        %1027 = vmatprep.mubr.f32.mxu0 0.0
        %1028 = vmatmul.mubr.f32.gmra.mrb[0].mxu0 %v851
        %v1029 = vpop.f32.mrb[0].mxu0
        %v1030 = vadd.f32 0.0, %v1029
        %v1031 = vpop.f32.mrb[0].mxu0
        %1032 = vmatprep.mubr.f32.mxu0 0.0
        %1033 = vmatmul.mubr.f32.gmra.mrb[0].mxu0 %v852
        %v1034 = vpop.f32.mrb[0].mxu0
        %v1035 = vadd.f32 0.0, %v1034
        %v1036 = vpop.f32.mrb[0].mxu0
        %1037 = vmatprep.mubr.f32.mxu0 0.0
        %1038 = vmatmul.mubr.f32.gmra.mrb[0].mxu0 %v853
        %v1039 = vpop.f32.mrb[0].mxu0
        %v1040 = vadd.f32 0.0, %v1039
        %v1041 = vpop.f32.mrb[0].mxu0
        %1042 = vmatprep.mubr.f32.mxu0 0.0
        %1043 = vmatmul.mubr.f32.gmra.mrb[0].mxu0 %v854
        %v1044 = vpop.f32.mrb[0].mxu0
        %v1045 = vadd.f32 0.0, %v1044
        %v1046 = vpop.f32.mrb[0].mxu0
        %1047 = vmatprep.mubr.f32.mxu0 0.0
        %1048 = vmatmul.mubr.f32.gmra.mrb[0].mxu0 %v855
        %v1049 = vpop.f32.mrb[0].mxu0
        %v1050 = vadd.f32 0.0, %v1049
        %v1051 = vpop.f32.mrb[0].mxu0
        %1052 = vmatprep.mubr.f32.mxu0 0.0
        %1053 = vmatmul.mubr.f32.gmra.mrb[0].mxu0 %v856
        %v1054 = vpop.f32.mrb[0].mxu0
        %v1055 = vadd.f32 0.0, %v1054
        %v1056 = vpop.f32.mrb[0].mxu0
        %1057 = vmatprep.mubr.f32.mxu0 0.0
        %1058 = vmatmul.mubr.f32.gmra.mrb[0].mxu0 %v857
        %v1059 = vpop.f32.mrb[0].mxu0
        %v1060 = vadd.f32 0.0, %v1059
        %v1061 = vpop.f32.mrb[0].mxu0
        %1062 = vmatprep.mubr.f32.mxu0 0.0
        %1063 = vmatmul.mubr.f32.gmra.mrb[0].mxu0 %v858
        %v1064 = vpop.f32.mrb[0].mxu0
        %v1065 = vadd.f32 0.0, %v1064
        %v1066 = vpop.f32.mrb[0].mxu0
        %1067 = vmatprep.mubr.f32.mxu0 0.0
        %1068 = vmatmul.mubr.f32.gmra.mrb[0].mxu0 %v859
        %v1069 = vpop.f32.mrb[0].mxu0
        %v1070 = vadd.f32 0.0, %v1069
        %v1071 = vpop.f32.mrb[0].mxu0
        %1072 = vmatprep.mubr.f32.mxu0 0.0
        %1073 = vmatmul.mubr.f32.gmra.mrb[0].mxu0 %v860
        %v1074 = vpop.f32.mrb[0].mxu0
        %v1075 = vadd.f32 0.0, %v1074
        %v1076 = vpop.f32.mrb[0].mxu0
        %1077 = vmatprep.mubr.f32.mxu0 0.0
        %1078 = vmatmul.mubr.f32.gmra.mrb[0].mxu0 %v861
        %v1079 = vpop.f32.mrb[0].mxu0
        %v1080 = vadd.f32 0.0, %v1079
        %v1081 = vpop.f32.mrb[0].mxu0
        %1082 = vmatprep.mubr.f32.mxu0 0.0
        %1083 = vmatmul.mubr.f32.gmra.mrb[0].mxu0 %v862
        %v1084 = vpop.f32.mrb[0].mxu0
        %v1085 = vadd.f32 0.0, %v1084
        %v1086 = vpop.f32.mrb[0].mxu0
        %1087 = vmatprep.mubr.f32.mxu0 0.0
        %1088 = vmatmul.mubr.f32.gmra.mrb[0].mxu0 %v863
        %v1089 = vpop.f32.mrb[0].mxu0
        %v1090 = vadd.f32 0.0, %v1089
        %v1091 = vpop.f32.mrb[0].mxu0
        %1092 = vmatprep.mubr.f32.mxu0 0.0
        %1093 = vmatmul.mubr.f32.gmra.mrb[0].mxu0 %v864
        %v1094 = vpop.f32.mrb[0].mxu0
        %v1095 = vadd.f32 0.0, %v1094
        %v1096 = vpop.f32.mrb[0].mxu0
        %1097 = vmatprep.mubr.f32.mxu0 0.0
        %1098 = vmatmul.mubr.f32.gmra.mrb[0].mxu0 %v865
        %v1099 = vpop.f32.mrb[0].mxu0
        %v1100 = vadd.f32 0.0, %v1099
        %v1101 = vpop.f32.mrb[0].mxu0
        %1102 = vmatprep.mubr.f32.mxu0 0.0
        %1103 = vmatmul.mubr.f32.gmra.mrb[0].mxu0 %v866
        %v1104 = vpop.f32.mrb[0].mxu0
        %v1105 = vadd.f32 0.0, %v1104
        %v1106 = vpop.f32.mrb[0].mxu0
        %1107 = vmatprep.mubr.f32.mxu0 0.0
        %1108 = vmatmul.mubr.f32.gmra.mrb[0].mxu0 %v867
        %v1109 = vpop.f32.mrb[0].mxu0
        %v1110 = vadd.f32 0.0, %v1109
        %v1111 = vpop.f32.mrb[0].mxu0
        %1112 = vmatprep.mubr.f32.mxu0 0.0
        %1113 = vmatmul.mubr.f32.gmra.mrb[0].mxu0 %v868
        %v1114 = vpop.f32.mrb[0].mxu0
        %v1115 = vadd.f32 0.0, %v1114
        %v1116 = vpop.f32.mrb[0].mxu0
        %1117 = vmatprep.mubr.f32.mxu0 0.0
        %1118 = vmatmul.mubr.f32.gmra.mrb[0].mxu0 %v869
        %v1119 = vpop.f32.mrb[0].mxu0
        %v1120 = vadd.f32 0.0, %v1119
        %v1121 = vpop.f32.mrb[0].mxu0
        %1122 = vmatprep.mubr.f32.mxu0 0.0
        %1123 = vmatmul.mubr.f32.gmra.mrb[0].mxu0 %v870
        %v1124 = vpop.f32.mrb[0].mxu0
        %v1125 = vadd.f32 0.0, %v1124
        %v1126 = vpop.f32.mrb[0].mxu0
        %1127 = vdwg.mxu0
        %1128 = vmatprep.subr.mxu0 0.0
        %1129 = vmatpush1.msra.mxu0 %v871
        %1130 = vmatprep.subr.mxu0 0.0
        %1131 = vmatpush1.msra.mxu0 %v872
        %1132 = vmatprep.subr.mxu0 0.0
        %1133 = vmatpush1.msra.mxu0 %v873
        %1134 = vmatprep.subr.mxu0 0.0
        %1135 = vmatpush1.msra.mxu0 %v874
        %1136 = vmatprep.subr.mxu0 0.0
        %1137 = vmatpush1.msra.mxu0 %v875
        %1138 = vmatprep.subr.mxu0 0.0
        %1139 = vmatpush1.msra.mxu0 %v876
        %1140 = vmatprep.subr.mxu0 0.0
        %1141 = vmatpush1.msra.mxu0 %v877
        %1142 = vmatprep.subr.mxu0 0.0
        %1143 = vmatpush1.msra.mxu0 %v878
        %1144 = vmatprep.subr.mxu0 0.0
        %1145 = vmatpush1.msra.mxu0 %v879
        %1146 = vmatprep.subr.mxu0 0.0
        %1147 = vmatpush1.msra.mxu0 %v880
        %1148 = vmatprep.subr.mxu0 0.0
        %1149 = vmatpush1.msra.mxu0 %v881
        %1150 = vmatprep.subr.mxu0 0.0
        %1151 = vmatpush1.msra.mxu0 %v882
        %1152 = vmatprep.subr.mxu0 0.0
        %1153 = vmatpush1.msra.mxu0 %v883
        %1154 = vmatprep.subr.mxu0 0.0
        %1155 = vmatpush1.msra.mxu0 %v884
        %1156 = vmatprep.subr.mxu0 0.0
        %1157 = vmatpush1.msra.mxu0 %v885
        %1158 = vmatprep.subr.mxu0 0.0
        %1159 = vmatpush1.msra.mxu0 %v886
        %1160 = vmatprep.subr.mxu0 0.0
        %1161 = vmatpush1.msra.mxu0 0.0
        %1162 = vmatprep.subr.mxu0 0.0
        %1163 = vmatpush1.msra.mxu0 0.0
        %1164 = vmatprep.subr.mxu0 0.0
        %1165 = vmatpush1.msra.mxu0 0.0
        %1166 = vmatprep.subr.mxu0 0.0
        %1167 = vmatpush1.msra.mxu0 0.0
        %1168 = vmatprep.subr.mxu0 0.0
        %1169 = vmatpush1.msra.mxu0 0.0
        %1170 = vmatprep.subr.mxu0 0.0
        %1171 = vmatpush1.msra.mxu0 0.0
        %1172 = vmatprep.subr.mxu0 0.0
        %1173 = vmatpush1.msra.mxu0 0.0
        %1174 = vmatprep.subr.mxu0 0.0
        %1175 = vmatpush1.msra.mxu0 0.0
        %1176 = vmatprep.subr.mxu0 0.0
        %1177 = vmatpush1.msra.mxu0 0.0
        %1178 = vmatprep.subr.mxu0 0.0
        %1179 = vmatpush1.msra.mxu0 0.0
        %1180 = vmatprep.subr.mxu0 0.0
        %1181 = vmatpush1.msra.mxu0 0.0
        %1182 = vmatprep.subr.mxu0 0.0
        %1183 = vmatpush1.msra.mxu0 0.0
        %1184 = vmatprep.subr.mxu0 0.0
        %1185 = vmatpush1.msra.mxu0 0.0
        %1186 = vmatprep.subr.mxu0 0.0
        %1187 = vmatpush1.msra.mxu0 0.0
        %1188 = vmatprep.subr.mxu0 0.0
        %1189 = vmatpush1.msra.mxu0 0.0
        %1190 = vmatprep.subr.mxu0 0.0
        %1191 = vmatpush1.msra.mxu0 0.0
        %1192 = vmatprep.mubr.f32.mxu0 0.0
        %1193 = vmatmul.mubr.f32.gmra.mrb[0].mxu0 %v807
        %v1194 = vpop.f32.mrb[0].mxu0
        %v1195 = vadd.f32 %v970, %v1194
        %v1196 = vpop.f32.mrb[0].mxu0
        %1197 = vmatprep.mubr.f32.mxu0 0.0
        %1198 = vmatmul.mubr.f32.gmra.mrb[0].mxu0 %v808
        %v1199 = vpop.f32.mrb[0].mxu0
        %v1200 = vadd.f32 %v975, %v1199
        %v1201 = vpop.f32.mrb[0].mxu0
        %1202 = vmatprep.mubr.f32.mxu0 0.0
        %1203 = vmatmul.mubr.f32.gmra.mrb[0].mxu0 %v809
        %v1204 = vpop.f32.mrb[0].mxu0
        %v1205 = vadd.f32 %v980, %v1204
        %v1206 = vpop.f32.mrb[0].mxu0
        %1207 = vmatprep.mubr.f32.mxu0 0.0
        %1208 = vmatmul.mubr.f32.gmra.mrb[0].mxu0 %v810
        %v1209 = vpop.f32.mrb[0].mxu0
        %v1210 = vadd.f32 %v985, %v1209
        %v1211 = vpop.f32.mrb[0].mxu0
        %1212 = vmatprep.mubr.f32.mxu0 0.0
        %1213 = vmatmul.mubr.f32.gmra.mrb[0].mxu0 %v811
        %v1214 = vpop.f32.mrb[0].mxu0
        %v1215 = vadd.f32 %v990, %v1214
        %v1216 = vpop.f32.mrb[0].mxu0
        %1217 = vmatprep.mubr.f32.mxu0 0.0
        %1218 = vmatmul.mubr.f32.gmra.mrb[0].mxu0 %v812
        %v1219 = vpop.f32.mrb[0].mxu0
        %v1220 = vadd.f32 %v995, %v1219
        %v1221 = vpop.f32.mrb[0].mxu0
        %1222 = vmatprep.mubr.f32.mxu0 0.0
        %1223 = vmatmul.mubr.f32.gmra.mrb[0].mxu0 %v813
        %v1224 = vpop.f32.mrb[0].mxu0
        %v1225 = vadd.f32 %v1000, %v1224
        %v1226 = vpop.f32.mrb[0].mxu0
        %1227 = vmatprep.mubr.f32.mxu0 0.0
        %1228 = vmatmul.mubr.f32.gmra.mrb[0].mxu0 %v814
        %v1229 = vpop.f32.mrb[0].mxu0
        %v1230 = vadd.f32 %v1005, %v1229
        %v1231 = vpop.f32.mrb[0].mxu0
        %1232 = vmatprep.mubr.f32.mxu0 0.0
        %1233 = vmatmul.mubr.f32.gmra.mrb[0].mxu0 %v815
        %v1234 = vpop.f32.mrb[0].mxu0
        %v1235 = vadd.f32 %v1010, %v1234
        %v1236 = vpop.f32.mrb[0].mxu0
        %1237 = vmatprep.mubr.f32.mxu0 0.0
        %1238 = vmatmul.mubr.f32.gmra.mrb[0].mxu0 %v816
        %v1239 = vpop.f32.mrb[0].mxu0
        %v1240 = vadd.f32 %v1015, %v1239
        %v1241 = vpop.f32.mrb[0].mxu0
        %1242 = vmatprep.mubr.f32.mxu0 0.0
        %1243 = vmatmul.mubr.f32.gmra.mrb[0].mxu0 %v817
        %v1244 = vpop.f32.mrb[0].mxu0
        %v1245 = vadd.f32 %v1020, %v1244
        %v1246 = vpop.f32.mrb[0].mxu0
        %1247 = vmatprep.mubr.f32.mxu0 0.0
        %1248 = vmatmul.mubr.f32.gmra.mrb[0].mxu0 %v818
        %v1249 = vpop.f32.mrb[0].mxu0
        %v1250 = vadd.f32 %v1025, %v1249
        %v1251 = vpop.f32.mrb[0].mxu0
        %1252 = vmatprep.mubr.f32.mxu0 0.0
        %1253 = vmatmul.mubr.f32.gmra.mrb[0].mxu0 %v819
        %v1254 = vpop.f32.mrb[0].mxu0
        %v1255 = vadd.f32 %v1030, %v1254
        %v1256 = vpop.f32.mrb[0].mxu0
        %1257 = vmatprep.mubr.f32.mxu0 0.0
        %1258 = vmatmul.mubr.f32.gmra.mrb[0].mxu0 %v820
        %v1259 = vpop.f32.mrb[0].mxu0
        %v1260 = vadd.f32 %v1035, %v1259
        %v1261 = vpop.f32.mrb[0].mxu0
        %1262 = vmatprep.mubr.f32.mxu0 0.0
        %1263 = vmatmul.mubr.f32.gmra.mrb[0].mxu0 %v821
        %v1264 = vpop.f32.mrb[0].mxu0
        %v1265 = vadd.f32 %v1040, %v1264
        %v1266 = vpop.f32.mrb[0].mxu0
        %1267 = vmatprep.mubr.f32.mxu0 0.0
        %1268 = vmatmul.mubr.f32.gmra.mrb[0].mxu0 %v822
        %v1269 = vpop.f32.mrb[0].mxu0
        %v1270 = vadd.f32 %v1045, %v1269
        %v1271 = vpop.f32.mrb[0].mxu0
        %1272 = vmatprep.mubr.f32.mxu0 0.0
        %1273 = vmatmul.mubr.f32.gmra.mrb[0].mxu0 %v823
        %v1274 = vpop.f32.mrb[0].mxu0
        %v1275 = vadd.f32 %v1050, %v1274
        %v1276 = vpop.f32.mrb[0].mxu0
        %1277 = vmatprep.mubr.f32.mxu0 0.0
        %1278 = vmatmul.mubr.f32.gmra.mrb[0].mxu0 %v824
        %v1279 = vpop.f32.mrb[0].mxu0
        %v1280 = vadd.f32 %v1055, %v1279
        %v1281 = vpop.f32.mrb[0].mxu0
        %1282 = vmatprep.mubr.f32.mxu0 0.0
        %1283 = vmatmul.mubr.f32.gmra.mrb[0].mxu0 %v825
        %v1284 = vpop.f32.mrb[0].mxu0
        %v1285 = vadd.f32 %v1060, %v1284
        %v1286 = vpop.f32.mrb[0].mxu0
        %1287 = vmatprep.mubr.f32.mxu0 0.0
        %1288 = vmatmul.mubr.f32.gmra.mrb[0].mxu0 %v826
        %v1289 = vpop.f32.mrb[0].mxu0
        %v1290 = vadd.f32 %v1065, %v1289
        %v1291 = vpop.f32.mrb[0].mxu0
        %1292 = vmatprep.mubr.f32.mxu0 0.0
        %1293 = vmatmul.mubr.f32.gmra.mrb[0].mxu0 %v827
        %v1294 = vpop.f32.mrb[0].mxu0
        %v1295 = vadd.f32 %v1070, %v1294
        %v1296 = vpop.f32.mrb[0].mxu0
        %1297 = vmatprep.mubr.f32.mxu0 0.0
        %1298 = vmatmul.mubr.f32.gmra.mrb[0].mxu0 %v828
        %v1299 = vpop.f32.mrb[0].mxu0
        %v1300 = vadd.f32 %v1075, %v1299
        %v1301 = vpop.f32.mrb[0].mxu0
        %1302 = vmatprep.mubr.f32.mxu0 0.0
        %1303 = vmatmul.mubr.f32.gmra.mrb[0].mxu0 %v829
        %v1304 = vpop.f32.mrb[0].mxu0
        %v1305 = vadd.f32 %v1080, %v1304
        %v1306 = vpop.f32.mrb[0].mxu0
        %1307 = vmatprep.mubr.f32.mxu0 0.0
        %1308 = vmatmul.mubr.f32.gmra.mrb[0].mxu0 %v830
        %v1309 = vpop.f32.mrb[0].mxu0
        %v1310 = vadd.f32 %v1085, %v1309
        %v1311 = vpop.f32.mrb[0].mxu0
        %1312 = vmatprep.mubr.f32.mxu0 0.0
        %1313 = vmatmul.mubr.f32.gmra.mrb[0].mxu0 %v831
        %v1314 = vpop.f32.mrb[0].mxu0
        %v1315 = vadd.f32 %v1090, %v1314
        %v1316 = vpop.f32.mrb[0].mxu0
        %1317 = vmatprep.mubr.f32.mxu0 0.0
        %1318 = vmatmul.mubr.f32.gmra.mrb[0].mxu0 %v832
        %v1319 = vpop.f32.mrb[0].mxu0
        %v1320 = vadd.f32 %v1095, %v1319
        %v1321 = vpop.f32.mrb[0].mxu0
        %1322 = vmatprep.mubr.f32.mxu0 0.0
        %1323 = vmatmul.mubr.f32.gmra.mrb[0].mxu0 %v833
        %v1324 = vpop.f32.mrb[0].mxu0
        %v1325 = vadd.f32 %v1100, %v1324
        %v1326 = vpop.f32.mrb[0].mxu0
        %1327 = vmatprep.mubr.f32.mxu0 0.0
        %1328 = vmatmul.mubr.f32.gmra.mrb[0].mxu0 %v834
        %v1329 = vpop.f32.mrb[0].mxu0
        %v1330 = vadd.f32 %v1105, %v1329
        %v1331 = vpop.f32.mrb[0].mxu0
        %1332 = vmatprep.mubr.f32.mxu0 0.0
        %1333 = vmatmul.mubr.f32.gmra.mrb[0].mxu0 %v835
        %v1334 = vpop.f32.mrb[0].mxu0
        %v1335 = vadd.f32 %v1110, %v1334
        %v1336 = vpop.f32.mrb[0].mxu0
        %1337 = vmatprep.mubr.f32.mxu0 0.0
        %1338 = vmatmul.mubr.f32.gmra.mrb[0].mxu0 %v836
        %v1339 = vpop.f32.mrb[0].mxu0
        %v1340 = vadd.f32 %v1115, %v1339
        %v1341 = vpop.f32.mrb[0].mxu0
        %1342 = vmatprep.mubr.f32.mxu0 0.0
        %1343 = vmatmul.mubr.f32.gmra.mrb[0].mxu0 %v837
        %v1344 = vpop.f32.mrb[0].mxu0
        %v1345 = vadd.f32 %v1120, %v1344
        %v1346 = vpop.f32.mrb[0].mxu0
        %1347 = vmatprep.mubr.f32.mxu0 0.0
        %1348 = vmatmul.mubr.f32.gmra.mrb[0].mxu0 %v838
        %v1349 = vpop.f32.mrb[0].mxu0
        %v1350 = vadd.f32 %v1125, %v1349
        %v1351 = vpop.f32.mrb[0].mxu0
        %1352 = vdwg.mxu0
        %v1353 = vld [vmem:[#allocation10] sm:$0x1]
        %v1355 = vlaneseq
        %v1356 = vshrl.u32 %v1355, 7
        %v1357 = vsub.s32 0, %v1356
        %v1358 = vrot.slane %v1353, %v1357
        %v1360 = vadd.f32 %v1195, %v1358
        %v1361 = vadd.f32 %v1200, %v1358
        %v1362 = vadd.f32 %v1205, %v1358
        %v1363 = vadd.f32 %v1210, %v1358
        %v1364 = vadd.f32 %v1215, %v1358
        %v1365 = vadd.f32 %v1220, %v1358
        %v1366 = vadd.f32 %v1225, %v1358
        %v1367 = vadd.f32 %v1230, %v1358
        %v1368 = vadd.f32 %v1235, %v1358
        %v1369 = vadd.f32 %v1240, %v1358
        %v1370 = vadd.f32 %v1245, %v1358
        %v1371 = vadd.f32 %v1250, %v1358
        %v1372 = vadd.f32 %v1255, %v1358
        %v1373 = vadd.f32 %v1260, %v1358
        %v1374 = vadd.f32 %v1265, %v1358
        %v1375 = vadd.f32 %v1270, %v1358
        %v1376 = vadd.f32 %v1275, %v1358
        %v1377 = vadd.f32 %v1280, %v1358
        %v1378 = vadd.f32 %v1285, %v1358
        %v1379 = vadd.f32 %v1290, %v1358
        %v1380 = vadd.f32 %v1295, %v1358
        %v1381 = vadd.f32 %v1300, %v1358
        %v1382 = vadd.f32 %v1305, %v1358
        %v1383 = vadd.f32 %v1310, %v1358
        %v1384 = vadd.f32 %v1315, %v1358
        %v1385 = vadd.f32 %v1320, %v1358
        %v1386 = vadd.f32 %v1325, %v1358
        %v1387 = vadd.f32 %v1330, %v1358
        %v1388 = vadd.f32 %v1335, %v1358
        %v1389 = vadd.f32 %v1340, %v1358
        %v1390 = vadd.f32 %v1345, %v1358
        %v1391 = vadd.f32 %v1350, %v1358
        %v1392 = vadd.f32 %v1360, %v839
        %v1393 = vadd.f32 %v1361, %v840
        %v1394 = vadd.f32 %v1362, %v841
        %v1395 = vadd.f32 %v1363, %v842
        %v1396 = vadd.f32 %v1364, %v843
        %v1397 = vadd.f32 %v1365, %v844
        %v1398 = vadd.f32 %v1366, %v845
        %v1399 = vadd.f32 %v1367, %v846
        %v1400 = vadd.f32 %v1368, %v847
        %v1401 = vadd.f32 %v1369, %v848
        %v1402 = vadd.f32 %v1370, %v849
        %v1403 = vadd.f32 %v1371, %v850
        %v1404 = vadd.f32 %v1372, %v851
        %v1405 = vadd.f32 %v1373, %v852
        %v1406 = vadd.f32 %v1374, %v853
        %v1407 = vadd.f32 %v1375, %v854
        %v1408 = vadd.f32 %v1376, %v855
        %v1409 = vadd.f32 %v1377, %v856
        %v1410 = vadd.f32 %v1378, %v857
        %v1411 = vadd.f32 %v1379, %v858
        %v1412 = vadd.f32 %v1380, %v859
        %v1413 = vadd.f32 %v1381, %v860
        %v1414 = vadd.f32 %v1382, %v861
        %v1415 = vadd.f32 %v1383, %v862
        %v1416 = vadd.f32 %v1384, %v863
        %v1417 = vadd.f32 %v1385, %v864
        %v1418 = vadd.f32 %v1386, %v865
        %v1419 = vadd.f32 %v1387, %v866
        %v1420 = vadd.f32 %v1388, %v867
        %v1421 = vadd.f32 %v1389, %v868
        %v1422 = vadd.f32 %v1390, %v869
        %v1423 = vadd.f32 %v1391, %v870
        %v1424 = vmax.f32 %v1392, 0.0
        %v1425 = vmax.f32 %v1393, 0.0
        %v1426 = vmax.f32 %v1394, 0.0
        %v1427 = vmax.f32 %v1395, 0.0
        %v1428 = vmax.f32 %v1396, 0.0
        %v1429 = vmax.f32 %v1397, 0.0
        %v1430 = vmax.f32 %v1398, 0.0
        %v1431 = vmax.f32 %v1399, 0.0
        %v1432 = vmax.f32 %v1400, 0.0
        %v1433 = vmax.f32 %v1401, 0.0
        %v1434 = vmax.f32 %v1402, 0.0
        %v1435 = vmax.f32 %v1403, 0.0
        %v1436 = vmax.f32 %v1404, 0.0
        %v1437 = vmax.f32 %v1405, 0.0
        %v1438 = vmax.f32 %v1406, 0.0
        %v1439 = vmax.f32 %v1407, 0.0
        %v1440 = vmax.f32 %v1408, 0.0
        %v1441 = vmax.f32 %v1409, 0.0
        %v1442 = vmax.f32 %v1410, 0.0
        %v1443 = vmax.f32 %v1411, 0.0
        %v1444 = vmax.f32 %v1412, 0.0
        %v1445 = vmax.f32 %v1413, 0.0
        %v1446 = vmax.f32 %v1414, 0.0
        %v1447 = vmax.f32 %v1415, 0.0
        %v1448 = vmax.f32 %v1416, 0.0
        %v1449 = vmax.f32 %v1417, 0.0
        %v1450 = vmax.f32 %v1418, 0.0
        %v1451 = vmax.f32 %v1419, 0.0
        %v1452 = vmax.f32 %v1420, 0.0
        %v1453 = vmax.f32 %v1421, 0.0
        %v1454 = vmax.f32 %v1422, 0.0
        %v1455 = vmax.f32 %v1423, 0.0
        %1456 = vst [vmem:[%s348] sm:$0xff] %v1424
        %1457 = vst [vmem:[%s348 + $0x8] sm:$0xff] %v1425
        %1458 = vst [vmem:[%s348 + $0x10] sm:$0xff] %v1426
        %1459 = vst [vmem:[%s348 + $0x18] sm:$0xff] %v1427
        %1460 = vst [vmem:[%s348 + $0x20] sm:$0xff] %v1428
        %1461 = vst [vmem:[%s348 + $0x28] sm:$0xff] %v1429
        %1462 = vst [vmem:[%s348 + $0x30] sm:$0xff] %v1430
        %1463 = vst [vmem:[%s348 + $0x38] sm:$0xff] %v1431
        %1464 = vst [vmem:[%s348 + $0x40] sm:$0xff] %v1432
        %1465 = vst [vmem:[%s348 + $0x48] sm:$0xff] %v1433
        %1466 = vst [vmem:[%s348 + $0x50] sm:$0xff] %v1434
        %1467 = vst [vmem:[%s348 + $0x58] sm:$0xff] %v1435
        %1468 = vst [vmem:[%s348 + $0x60] sm:$0xff] %v1436
        %1469 = vst [vmem:[%s348 + $0x68] sm:$0xff] %v1437
        %1470 = vst [vmem:[%s348 + $0x70] sm:$0xff] %v1438
        %1471 = vst [vmem:[%s348 + $0x78] sm:$0xff] %v1439
        %1472 = vst [vmem:[%s348 + $0x80] sm:$0xff] %v1440
        %1473 = vst [vmem:[%s348 + $0x88] sm:$0xff] %v1441
        %1474 = vst [vmem:[%s348 + $0x90] sm:$0xff] %v1442
        %1475 = vst [vmem:[%s348 + $0x98] sm:$0xff] %v1443
        %1476 = vst [vmem:[%s348 + $0xa0] sm:$0xff] %v1444
        %1477 = vst [vmem:[%s348 + $0xa8] sm:$0xff] %v1445
        %1478 = vst [vmem:[%s348 + $0xb0] sm:$0xff] %v1446
        %1479 = vst [vmem:[%s348 + $0xb8] sm:$0xff] %v1447
        %1480 = vst [vmem:[%s348 + $0xc0] sm:$0xff] %v1448
        %1481 = vst [vmem:[%s348 + $0xc8] sm:$0xff] %v1449
        %1482 = vst [vmem:[%s348 + $0xd0] sm:$0xff] %v1450
        %1483 = vst [vmem:[%s348 + $0xd8] sm:$0xff] %v1451
        %1484 = vst [vmem:[%s348 + $0xe0] sm:$0xff] %v1452
        %1485 = vst [vmem:[%s348 + $0xe8] sm:$0xff] %v1453
        %1486 = vst [vmem:[%s348 + $0xf0] sm:$0xff] %v1454
        %1487 = vst [vmem:[%s348 + $0xf8] sm:$0xff] %v1455
        %s1488 = sand.u32 %s149, 1
        %s1489 = scalar_lea.sflag [#allocation4], %s1488
        %s1490 = sand.u32 %s149, 1
        %s1491 = smul.addr %s1490, 256
        %s1492 = scalar_lea.vmem [#allocation11], %s1491
        // Predicated region
        $region61: #{tpu_custom_call.1} parent=39 // pred_check
          %p1493 = pneg %p159
        $region62: #{tpu_custom_call.1} parent=39 // pred_check_branch
          %1495 = sbr.rel (%p1493) target = $region64
        $region63: #{tpu_custom_call.1} parent=39 // pred_region
          %s1496 = smul.u32 32, %s26
          %s1498 = ssub.s32 4096, 4096
          %1499 = vsyncadd %s1489, %s1498
          %s1500 = smul.addr %s1496, 128
          %s1501 = scalar_lea.hbm %s5, %s1500
          %s1502 = sshll.u32 %s1492, 4
          %s1503 = int_to_ptr.vmem [resolvable:$true] %s1502
          %1508 = dma.vmem_to_hbm [thread:$0]  %s1503, 4096, %s1501, %s1489, 128, 128, 8
        $region64: #{tpu_custom_call.1} parent=39 // pred_fallthru
          _
      $region40: #{tpu_custom_call.1} parent=5 // pred_fallthru
        _
      %p1509 = scmp.le.s32.totalorder 2, %s21
      // Predicated region
      $region65: #{tpu_custom_call.1} parent=5 // pred_check
        %p1510 = pneg %p1509
      $region66: #{tpu_custom_call.1} parent=5 // pred_check_branch
        %1512 = sbr.rel (%p1510) target = $region68
      $region67: #{tpu_custom_call.1} parent=5 // pred_region
        %s1513 = ssub.s32 %s21, 2
        // Predicated region
        $region69: #{tpu_custom_call.1} parent=67 // pred_check
          %p1514 = pneg %p165
        $region70: #{tpu_custom_call.1} parent=67 // pred_check_branch
          %1516 = sbr.rel (%p1514) target = $region72
        $region71: #{tpu_custom_call.1} parent=67 // pred_region
          %s1517 = sand.u32 %s150, 1
          %s1518 = scalar_lea.sflag [#allocation4], %s1517
          %s1519 = sand.u32 %s150, 1
          %s1520 = smul.addr %s1519, 256
          %s1521 = scalar_lea.vmem [#allocation11], %s1520
          %1522 = dma.done %s1518, 4096
        $region72: #{tpu_custom_call.1} parent=67 // pred_fallthru
          _
      $region68: #{tpu_custom_call.1} parent=5 // pred_fallthru
        _
    $region6: #{tpu_custom_call.1} parent=1 // loop_footer
      %s25 = sadd.s32 1, %s21
    $region7: #{tpu_custom_call.1} parent=1 // loop_footer_branch
      %20 = sbr.rel target = $region3
    $region8: #{tpu_custom_call.1} parent=1 // loop_exit
      _
    %1523 = vsyncpa [#allocation3], 1
    %s1524 = scalar_lea.sflag [#allocation3], 1
    %1525 = vsyncpa %s1524, 1
    %1526 = vsyncpa [#allocation6], 1
    %s1527 = scalar_lea.sflag [#allocation6], 1
    %1528 = vsyncpa %s1527, 1
    %1529 = vsyncpa [#allocation9], 1
    %1530 = vsyncpa [#allocation4], 1
    %s1531 = scalar_lea.sflag [#allocation4], 1
    %1532 = vsyncpa %s1531, 1

</llo_original>
